<compile_context>
chip_gen: v5e
topology: v5e:2x2
jax: 0.10.0
libtpu: 0.0.40
codegen_flags: <defaults>
</compile_context>

<pallas_src>
import math
import functools

import jax
import jax.numpy as jnp
from jax.experimental import pallas as pl
from jax.experimental.pallas import tpu as pltpu


# ----------------------------------------------------------------------------
# Kernel
# ----------------------------------------------------------------------------
def _layer_norm(x, gamma, beta, eps=1e-6):
    mu = jnp.mean(x, axis=-1, keepdims=True)
    var = jnp.mean((x - mu) ** 2, axis=-1, keepdims=True)
    return (x - mu) * jax.lax.rsqrt(var + eps) * gamma + beta


def encoder_stack_kernel(
    x0_ref, bias_ref,
    wqkv_ref, bqkv_ref, wo_ref, bo_ref,
    g1_ref, be1_ref,
    w1_ref, b1_ref, w2_ref, b2_ref,
    g2_ref, be2_ref,
    o_ref,
    *, num_heads, mm_dtype,
):
    """One encoder layer per grid step; activations stay resident in o_ref."""
    layer = pl.program_id(1)

    # Layer 0: seed the resident activation block from the embedded input.
    @pl.when(layer == 0)
    def _():
        o_ref[...] = x0_ref[...]

    x = o_ref[...]                                   # (bt, S, D) float32
    bt, S, D = x.shape
    H = num_heads
    dk = D // H
    n = bt * H
    scale = 1.0 / math.sqrt(dk)

    def bmm(pat, a, b):
        # MXU matmuls in mm_dtype (bf16 by default), fp32 accumulation.
        return jnp.einsum(pat, a.astype(mm_dtype), b.astype(mm_dtype),
                          preferred_element_type=jnp.float32)

    # ---- multi-head self attention, heads batched on a leading (bt*H) axis --
    # All reshapes/broadcasts below touch only major (non-lane/sublane) dims.
    x_n = jnp.broadcast_to(x[:, None], (bt, H, S, D)).reshape(n, S, D)
    wqkv = jnp.broadcast_to(wqkv_ref[0][None], (bt, H, D, 3 * dk)).reshape(n, D, 3 * dk)
    bqkv = jnp.broadcast_to(bqkv_ref[0][None], (bt, H, 1, 3 * dk)).reshape(n, 1, 3 * dk)
    qkv = bmm('nsd,nde->nse', x_n, wqkv) + bqkv      # (n, S, 3*dk), columns [q|k|v]
    q = qkv[:, :, 0 * dk:1 * dk]
    k = qkv[:, :, 1 * dk:2 * dk]
    v = qkv[:, :, 2 * dk:3 * dk]

    s = bmm('nqd,nkd->nqk', q, k) * scale            # (n, S, S)
    bias = jnp.broadcast_to(bias_ref[...][:, None], (bt, H, 1, S)).reshape(n, 1, S)
    s = s + bias                                     # additive mask bias (already * -1e9)
    m = jnp.max(s, axis=-1, keepdims=True)
    e = jnp.exp(s - m)
    p = e * pl.reciprocal(jnp.sum(e, axis=-1, keepdims=True), approx=True)

    ctx = bmm('nqk,nkd->nqd', p, v)                  # (n, S, dk)

    # Per-head slice of the output projection, then sum heads (major-axis add).
    wo = jnp.broadcast_to(wo_ref[0][None], (bt, H, dk, D)).reshape(n, dk, D)
    attn = bmm('nsd,nde->nse', ctx, wo)              # (n, S, D)
    attn = attn.reshape(bt, H, S, D).sum(axis=1) + bo_ref[0]
    # TODO(synk): attention / FFN dropout treated as identity (eval mode).

    # ---- residual + LayerNorm 1 (fp32) --------------------------------------
    x1 = _layer_norm(x + attn, g1_ref[0], be1_ref[0])

    # ---- position-wise feed forward ------------------------------------------
    dff = w1_ref.shape[-1]
    w1 = jnp.broadcast_to(w1_ref[0][None], (bt, D, dff))
    w2 = jnp.broadcast_to(w2_ref[0][None], (bt, dff, D))
    h1 = bmm('bsd,bdf->bsf', x1, w1) + b1_ref[0]
    h1 = jnp.maximum(h1, 0.0)
    f = bmm('bsf,bfd->bsd', h1, w2) + b2_ref[0]

    # ---- residual + LayerNorm 2; write back resident activations -------------
    o_ref[...] = _layer_norm(x1 + f, g2_ref[0], be2_ref[0])


# ----------------------------------------------------------------------------
# Wrapper: one pallas_call for the whole stack.
# ----------------------------------------------------------------------------
def encoder_stack(x0, bias, params, num_heads, *, block_b=None,
                  mm_dtype=jnp.bfloat16):
    """x0: (B, S, D) f32 embedded+PE input; bias: (B, 1, S) f32 = mask * -1e9."""
    B, S, D = x0.shape
    assert D % num_heads == 0
    L = params["wqkv"].shape[0]
    bt = B if block_b is None else block_b
    assert B % bt == 0

    def wspec(name):
        shape = params[name].shape
        nzeros = len(shape) - 1
        return pl.BlockSpec((1,) + shape[1:],
                            lambda b, l: (l,) + (0,) * nzeros)

    weight_order = ("wqkv", "bqkv", "wo", "bo", "g1", "be1",
                    "w1", "b1", "w2", "b2", "g2", "be2")

    in_specs = [
        pl.BlockSpec((bt, S, D), lambda b, l: (b, 0, 0)),   # x0 (fetched once per b)
        pl.BlockSpec((bt, 1, S), lambda b, l: (b, 0, 0)),   # additive mask bias
    ] + [wspec(name) for name in weight_order]

    kernel = functools.partial(encoder_stack_kernel,
                               num_heads=num_heads, mm_dtype=mm_dtype)
    return pl.pallas_call(
        kernel,
        out_shape=jax.ShapeDtypeStruct((B, S, D), jnp.float32),
        grid_spec=pltpu.PrefetchScalarGridSpec(
            num_scalar_prefetch=0,
            grid=(B // bt, L),                 # batch tiles outer, layers inner
            in_specs=in_specs,
            out_specs=pl.BlockSpec((bt, S, D), lambda b, l: (b, 0, 0)),
        ),
        compiler_params=pltpu.CompilerParams(
            dimension_semantics=("parallel", "arbitrary"),
            vmem_limit_bytes=32 * 1024 * 1024,
        ),
    )(x0, bias, *[params[name] for name in weight_order])


# ----------------------------------------------------------------------------
# Parameter init (PyTorch layout) + packing into stacked head-major arrays.
# ----------------------------------------------------------------------------
def make_positional_encoding(max_len, d_model):
    position = jnp.arange(max_len, dtype=jnp.float32)[:, None]
    div_term = jnp.exp(
        jnp.arange(0, d_model, 2, dtype=jnp.float32) * (-math.log(10000.0) / d_model)
    )
    pe = jnp.zeros((max_len, d_model), dtype=jnp.float32)
    pe = pe.at[:, 0::2].set(jnp.sin(position * div_term))
    pe = pe.at[:, 1::2].set(jnp.cos(position * div_term))
    return pe[None]  # (1, max_len, d_model)


def init_layer_params(key, d_model, dff):
    ks = jax.random.split(key, 6)
    n = lambda k, shape: (0.02 * jax.random.normal(k, shape)).astype(jnp.float32)
    # Linear weights stored transposed (in_features, out_features):
    # y = x @ W_t + b  (== PyTorch x @ W.T + b).
    return {
        "wq": n(ks[0], (d_model, d_model)), "bq": jnp.zeros((d_model,), jnp.float32),
        "wk": n(ks[1], (d_model, d_model)), "bk": jnp.zeros((d_model,), jnp.float32),
        "wv": n(ks[2], (d_model, d_model)), "bv": jnp.zeros((d_model,), jnp.float32),
        "wo": n(ks[3], (d_model, d_model)), "bo": jnp.zeros((d_model,), jnp.float32),
        "g1": jnp.ones((d_model,), jnp.float32), "be1": jnp.zeros((d_model,), jnp.float32),
        "w1": n(ks[4], (d_model, dff)),     "b1": jnp.zeros((dff,), jnp.float32),
        "w2": n(ks[5], (dff, d_model)),     "b2": jnp.zeros((d_model,), jnp.float32),
        "g2": jnp.ones((d_model,), jnp.float32), "be2": jnp.zeros((d_model,), jnp.float32),
    }


def pack_layer_params(layers, num_heads, mm_dtype=jnp.bfloat16):
    """Stack per-layer params along a leading L axis; attention weights are
    rearranged head-major (fused per-head QKV) for the batched-heads kernel."""
    D = layers[0]["wq"].shape[0]
    H = num_heads
    dk = D // H

    def per_layer(p):
        wq = p["wq"].reshape(D, H, dk)
        wk = p["wk"].reshape(D, H, dk)
        wv = p["wv"].reshape(D, H, dk)
        wqkv = jnp.stack([wq, wk, wv], axis=2)                     # (D, H, 3, dk)
        wqkv = jnp.transpose(wqkv, (1, 0, 2, 3)).reshape(H, D, 3 * dk)
        bqkv = jnp.stack([p["bq"].reshape(H, dk),
                          p["bk"].reshape(H, dk),
                          p["bv"].reshape(H, dk)], axis=1).reshape(H, 1, 3 * dk)
        wo = p["wo"].reshape(H, dk, D)                             # per-head rows of W_o
        return {
            "wqkv": wqkv, "bqkv": bqkv, "wo": wo, "bo": p["bo"].reshape(1, D),
            "g1": p["g1"].reshape(1, D), "be1": p["be1"].reshape(1, D),
            "w1": p["w1"], "b1": p["b1"].reshape(1, -1),
            "w2": p["w2"], "b2": p["b2"].reshape(1, D),
            "g2": p["g2"].reshape(1, D), "be2": p["be2"].reshape(1, D),
        }

    per = [per_layer(p) for p in layers]
    stacked = {k: jnp.stack([lp[k] for lp in per], axis=0) for k in per[0]}
    for k in ("wqkv", "wo", "w1", "w2"):          # MXU weights in bf16
        stacked[k] = stacked[k].astype(mm_dtype)
    return stacked


def encoder_forward(token_ids, src_mask, embedding, pe, stacked, *, num_heads,
                    mm_dtype=jnp.bfloat16):
    d_model = embedding.shape[1]
    S = token_ids.shape[1]
    # Embedding gather + sqrt(d_model) scale + positional encoding: one small
    # XLA fusion under jit (data-dependent gather stays outside the kernel).
    x0 = embedding[token_ids] * math.sqrt(d_model) + pe[:, :S]
    bias = src_mask * (-1e9)                       # hoisted additive mask bias
    return encoder_stack(x0.astype(jnp.float32), bias.astype(jnp.float32),
                         stacked, num_heads, mm_dtype=mm_dtype)


# ----------------------------------------------------------------------------
if __name__ == "__main__":
    num_layers = 2
    src_vocab_size = 50
    max_len = 16
    d_model = 32
    num_heads = 4
    dff = 64
    B, S = 2, 8

    key = jax.random.PRNGKey(0)
    k_emb, k_ids, *k_layers = jax.random.split(key, 2 + num_layers)

    embedding = (0.02 * jax.random.normal(k_emb, (src_vocab_size, d_model))).astype(jnp.float32)
    pe = make_positional_encoding(max_len, d_model)
    layer_params = [init_layer_params(k, d_model, dff) for k in k_layers]
    stacked = pack_layer_params(layer_params, num_heads)

    token_ids = jax.random.randint(k_ids, (B, S), 0, src_vocab_size, dtype=jnp.int32)
    # mask: 1.0 on positions to ignore; mask out the last 2 keys of batch 1.
    src_mask = jnp.zeros((B, 1, S), dtype=jnp.float32)
    src_mask = src_mask.at[1, 0, -2:].set(1.0)

    run = jax.jit(functools.partial(encoder_forward, num_heads=num_heads))
    out = run(token_ids, src_mask, embedding, pe, stacked)
    jax.block_until_ready(out)
    assert out.shape == (B, S, d_model) and out.dtype == jnp.float32
    print("KERNEL_OK")
</pallas_src>

<mosaic_0001>
module attributes {stable_mosaic.version = 11 : i64} {
  func.func @encoder_stack_kernel(%arg0: i32, %arg1: i32, %arg2: memref<2x8x32xf32, #tpu.memory_space<vmem>>, %arg3: memref<2x1x8xf32, #tpu.memory_space<vmem>>, %arg4: memref<1x4x32x24xbf16, #tpu.memory_space<vmem>>, %arg5: memref<1x4x1x24xf32, #tpu.memory_space<vmem>>, %arg6: memref<1x4x8x32xbf16, #tpu.memory_space<vmem>>, %arg7: memref<1x1x32xf32, #tpu.memory_space<vmem>>, %arg8: memref<1x1x32xf32, #tpu.memory_space<vmem>>, %arg9: memref<1x1x32xf32, #tpu.memory_space<vmem>>, %arg10: memref<1x32x64xbf16, #tpu.memory_space<vmem>>, %arg11: memref<1x1x64xf32, #tpu.memory_space<vmem>>, %arg12: memref<1x64x32xbf16, #tpu.memory_space<vmem>>, %arg13: memref<1x1x32xf32, #tpu.memory_space<vmem>>, %arg14: memref<1x1x32xf32, #tpu.memory_space<vmem>>, %arg15: memref<1x1x32xf32, #tpu.memory_space<vmem>>, %arg16: memref<2x8x32xf32, #tpu.memory_space<vmem>>) attributes {dimension_semantics = [#tpu.dimension_semantics<parallel>, #tpu.dimension_semantics<arbitrary>], iteration_bounds = array<i64: 1, 2>, scalar_prefetch = 0 : i64, scratch_operands = 0 : i64, tpu.core_type = #tpu.core_type<tc>, window_params = [{transform_indices = @transform_0, window_bounds = array<i64: 2, 8, 32>}, {transform_indices = @transform_1, window_bounds = array<i64: 2, 1, 8>}, {transform_indices = @transform_2, window_bounds = array<i64: 1, 4, 32, 24>}, {transform_indices = @transform_3, window_bounds = array<i64: 1, 4, 1, 24>}, {transform_indices = @transform_4, window_bounds = array<i64: 1, 4, 8, 32>}, {transform_indices = @transform_5, window_bounds = array<i64: 1, 1, 32>}, {transform_indices = @transform_6, window_bounds = array<i64: 1, 1, 32>}, {transform_indices = @transform_7, window_bounds = array<i64: 1, 1, 32>}, {transform_indices = @transform_8, window_bounds = array<i64: 1, 32, 64>}, {transform_indices = @transform_9, window_bounds = array<i64: 1, 1, 64>}, {transform_indices = @transform_10, window_bounds = array<i64: 1, 64, 32>}, {transform_indices = @transform_11, window_bounds = array<i64: 1, 1, 32>}, {transform_indices = @transform_12, window_bounds = array<i64: 1, 1, 32>}, {transform_indices = @transform_13, window_bounds = array<i64: 1, 1, 32>}, {transform_indices = @transform_14, window_bounds = array<i64: 2, 8, 32>}]} {
    %c0_i32 = arith.constant 0 : i32
    %0 = arith.cmpi eq, %arg1, %c0_i32 : i32
    %1 = arith.extui %0 : i1 to i32
    %c0_i32_0 = arith.constant 0 : i32
    %2 = arith.cmpi ne, %1, %c0_i32_0 : i32
    scf.if %2 {
      %c0_68 = arith.constant 0 : index
      %c0_69 = arith.constant 0 : index
      %c0_70 = arith.constant 0 : index
      %152 = vector.load %arg2[%c0_68, %c0_69, %c0_70] : memref<2x8x32xf32, #tpu.memory_space<vmem>>, vector<2x8x32xf32>
      %c0_71 = arith.constant 0 : index
      %c0_72 = arith.constant 0 : index
      %c0_73 = arith.constant 0 : index
      %153 = vector.load %arg16[%c0_71, %c0_72, %c0_73] : memref<2x8x32xf32, #tpu.memory_space<vmem>>, vector<2x8x32xf32>
      tpu.vector_store %arg16[%c0_71, %c0_72, %c0_73], %152 {strides = array<i32>} : memref<2x8x32xf32, #tpu.memory_space<vmem>>, vector<2x8x32xf32>,
    } else {
    }
    %c0 = arith.constant 0 : index
    %c0_1 = arith.constant 0 : index
    %c0_2 = arith.constant 0 : index
    %3 = vector.load %arg16[%c0, %c0_1, %c0_2] : memref<2x8x32xf32, #tpu.memory_space<vmem>>, vector<2x8x32xf32>
    %4 = vector.shape_cast %3 : vector<2x8x32xf32> to vector<2x1x8x32xf32>
    %5 = vector.shape_cast %4 : vector<2x1x8x32xf32> to vector<2x1x8x32xf32>
    %6 = vector.broadcast %5 : vector<2x1x8x32xf32> to vector<2x4x8x32xf32>
    %7 = vector.shape_cast %6 : vector<2x4x8x32xf32> to vector<8x8x32xf32>
    %c0_3 = arith.constant 0 : index
    %c0_4 = arith.constant 0 : index
    %c0_5 = arith.constant 0 : index
    %c0_6 = arith.constant 0 : index
    %8 = vector.load %arg4[%c0_3, %c0_4, %c0_5, %c0_6] : memref<1x4x32x24xbf16, #tpu.memory_space<vmem>>, vector<1x4x32x24xbf16>
    %9 = vector.shape_cast %8 : vector<1x4x32x24xbf16> to vector<4x32x24xbf16>
    %10 = vector.shape_cast %9 : vector<4x32x24xbf16> to vector<1x4x32x24xbf16>
    %11 = vector.shape_cast %10 : vector<1x4x32x24xbf16> to vector<1x4x32x24xbf16>
    %12 = vector.broadcast %11 : vector<1x4x32x24xbf16> to vector<2x4x32x24xbf16>
    %13 = vector.shape_cast %12 : vector<2x4x32x24xbf16> to vector<8x32x24xbf16>
    %c0_7 = arith.constant 0 : index
    %c0_8 = arith.constant 0 : index
    %c0_9 = arith.constant 0 : index
    %c0_10 = arith.constant 0 : index
    %14 = vector.load %arg5[%c0_7, %c0_8, %c0_9, %c0_10] : memref<1x4x1x24xf32, #tpu.memory_space<vmem>>, vector<1x4x1x24xf32>
    %15 = vector.shape_cast %14 : vector<1x4x1x24xf32> to vector<4x1x24xf32>
    %16 = vector.shape_cast %15 : vector<4x1x24xf32> to vector<1x4x1x24xf32>
    %17 = vector.shape_cast %16 : vector<1x4x1x24xf32> to vector<1x4x1x24xf32>
    %18 = vector.broadcast %17 : vector<1x4x1x24xf32> to vector<2x4x1x24xf32>
    %19 = vector.shape_cast %18 : vector<2x4x1x24xf32> to vector<8x1x24xf32>
    %20 = arith.truncf %7 : vector<8x8x32xf32> to vector<8x8x32xbf16>
    "tpu.trace_start"() <{level = 10 : i32, message = "nsd,nde->nse"}> : () -> ()
    %cst = arith.constant dense<0.000000e+00> : vector<8x8x24xf32>
    %21 = tpu.matmul %20, %13, %cst {dimension_numbers = #tpu.dot_dimension_numbers<[2], [1], [1], [2], [0, 0, 0, 1, 1, 2], [0], [0]>} : vector<8x8x32xbf16>, vector<8x32x24xbf16>, vector<8x8x24xf32> -> vector<8x8x24xf32>
    "tpu.trace_stop"() : () -> ()
    %22 = vector.broadcast %19 : vector<8x1x24xf32> to vector<8x8x24xf32>
    %23 = arith.addf %21, %22 : vector<8x8x24xf32>
    %24 = vector.extract_strided_slice %23 {offsets = [0, 0, 0], sizes = [8, 8, 8], strides = [1, 1, 1]} : vector<8x8x24xf32> to vector<8x8x8xf32>
    %25 = vector.extract_strided_slice %23 {offsets = [0, 0, 8], sizes = [8, 8, 8], strides = [1, 1, 1]} : vector<8x8x24xf32> to vector<8x8x8xf32>
    %26 = vector.extract_strided_slice %23 {offsets = [0, 0, 16], sizes = [8, 8, 8], strides = [1, 1, 1]} : vector<8x8x24xf32> to vector<8x8x8xf32>
    %27 = arith.truncf %24 : vector<8x8x8xf32> to vector<8x8x8xbf16>
    %28 = arith.truncf %25 : vector<8x8x8xf32> to vector<8x8x8xbf16>
    "tpu.trace_start"() <{level = 10 : i32, message = "nqd,nkd->nqk"}> : () -> ()
    %cst_11 = arith.constant dense<0.000000e+00> : vector<8x8x8xf32>
    %29 = tpu.matmul %27, %28, %cst_11 {dimension_numbers = #tpu.dot_dimension_numbers<[2], [2], [1], [1], [0, 0, 0, 1, 1, 1], [0], [0]>} : vector<8x8x8xbf16>, vector<8x8x8xbf16>, vector<8x8x8xf32> -> vector<8x8x8xf32>
    "tpu.trace_stop"() : () -> ()
    %cst_12 = arith.constant 0.353553385 : f32
    %30 = vector.broadcast %cst_12 : f32 to vector<8x8x8xf32>
    %31 = arith.mulf %29, %30 : vector<8x8x8xf32>
    %c0_13 = arith.constant 0 : index
    %c0_14 = arith.constant 0 : index
    %c0_15 = arith.constant 0 : index
    %32 = vector.load %arg3[%c0_13, %c0_14, %c0_15] : memref<2x1x8xf32, #tpu.memory_space<vmem>>, vector<2x1x8xf32>
    %33 = vector.shape_cast %32 : vector<2x1x8xf32> to vector<2x1x1x8xf32>
    %34 = vector.shape_cast %33 : vector<2x1x1x8xf32> to vector<2x1x1x8xf32>
    %35 = vector.broadcast %34 : vector<2x1x1x8xf32> to vector<2x4x1x8xf32>
    %36 = vector.shape_cast %35 : vector<2x4x1x8xf32> to vector<8x1x8xf32>
    %37 = vector.broadcast %36 : vector<8x1x8xf32> to vector<8x8x8xf32>
    %38 = arith.addf %31, %37 : vector<8x8x8xf32>
    %cst_16 = arith.constant dense<0xFF800000> : vector<8x8xf32>
    %39 = vector.multi_reduction <maximumf>, %38, %cst_16 [2] : vector<8x8x8xf32> to vector<8x8xf32>
    %40 = vector.shape_cast %39 : vector<8x8xf32> to vector<8x8x1xf32>
    %41 = vector.broadcast %40 : vector<8x8x1xf32> to vector<8x8x8xf32>
    %42 = arith.subf %38, %41 : vector<8x8x8xf32>
    %43 = math.exp %42 : vector<8x8x8xf32>
    %cst_17 = arith.constant dense<0.000000e+00> : vector<8x8xf32>
    %44 = vector.multi_reduction <add>, %43, %cst_17 [2] : vector<8x8x8xf32> to vector<8x8xf32>
    %45 = vector.shape_cast %44 : vector<8x8xf32> to vector<8x8x1xf32>
    %46 = tpu.reciprocal %45 {approx = true} : vector<8x8x1xf32> -> vector<8x8x1xf32>
    %47 = vector.broadcast %46 : vector<8x8x1xf32> to vector<8x8x8xf32>
    %48 = arith.mulf %43, %47 : vector<8x8x8xf32>
    %49 = arith.truncf %48 : vector<8x8x8xf32> to vector<8x8x8xbf16>
    %50 = arith.truncf %26 : vector<8x8x8xf32> to vector<8x8x8xbf16>
    "tpu.trace_start"() <{level = 10 : i32, message = "nqk,nkd->nqd"}> : () -> ()
    %cst_18 = arith.constant dense<0.000000e+00> : vector<8x8x8xf32>
    %51 = tpu.matmul %49, %50, %cst_18 {dimension_numbers = #tpu.dot_dimension_numbers<[2], [1], [1], [2], [0, 0, 0, 1, 1, 2], [0], [0]>} : vector<8x8x8xbf16>, vector<8x8x8xbf16>, vector<8x8x8xf32> -> vector<8x8x8xf32>
    "tpu.trace_stop"() : () -> ()
    %c0_19 = arith.constant 0 : index
    %c0_20 = arith.constant 0 : index
    %c0_21 = arith.constant 0 : index
    %c0_22 = arith.constant 0 : index
    %52 = vector.load %arg6[%c0_19, %c0_20, %c0_21, %c0_22] : memref<1x4x8x32xbf16, #tpu.memory_space<vmem>>, vector<1x4x8x32xbf16>
    %53 = vector.shape_cast %52 : vector<1x4x8x32xbf16> to vector<4x8x32xbf16>
    %54 = vector.shape_cast %53 : vector<4x8x32xbf16> to vector<1x4x8x32xbf16>
    %55 = vector.shape_cast %54 : vector<1x4x8x32xbf16> to vector<1x4x8x32xbf16>
    %56 = vector.broadcast %55 : vector<1x4x8x32xbf16> to vector<2x4x8x32xbf16>
    %57 = vector.shape_cast %56 : vector<2x4x8x32xbf16> to vector<8x8x32xbf16>
    %58 = arith.truncf %51 : vector<8x8x8xf32> to vector<8x8x8xbf16>
    "tpu.trace_start"() <{level = 10 : i32, message = "nsd,nde->nse"}> : () -> ()
    %cst_23 = arith.constant dense<0.000000e+00> : vector<8x8x32xf32>
    %59 = tpu.matmul %58, %57, %cst_23 {dimension_numbers = #tpu.dot_dimension_numbers<[2], [1], [1], [2], [0, 0, 0, 1, 1, 2], [0], [0]>} : vector<8x8x8xbf16>, vector<8x8x32xbf16>, vector<8x8x32xf32> -> vector<8x8x32xf32>
    "tpu.trace_stop"() : () -> ()
    %60 = vector.shape_cast %59 : vector<8x8x32xf32> to vector<2x4x8x32xf32>
    %cst_24 = arith.constant dense<0.000000e+00> : vector<2x8x32xf32>
    %61 = vector.multi_reduction <add>, %60, %cst_24 [1] : vector<2x4x8x32xf32> to vector<2x8x32xf32>
    %c0_25 = arith.constant 0 : index
    %c0_26 = arith.constant 0 : index
    %c0_27 = arith.constant 0 : index
    %62 = vector.load %arg7[%c0_25, %c0_26, %c0_27] : memref<1x1x32xf32, #tpu.memory_space<vmem>>, vector<1x1x32xf32>
    %63 = vector.shape_cast %62 : vector<1x1x32xf32> to vector<1x32xf32>
    %64 = vector.shape_cast %63 : vector<1x32xf32> to vector<1x1x32xf32>
    %65 = vector.broadcast %64 : vector<1x1x32xf32> to vector<2x8x32xf32>
    %66 = arith.addf %61, %65 : vector<2x8x32xf32>
    %67 = arith.addf %3, %66 : vector<2x8x32xf32>
    %c0_28 = arith.constant 0 : index
    %c0_29 = arith.constant 0 : index
    %c0_30 = arith.constant 0 : index
    %68 = vector.load %arg8[%c0_28, %c0_29, %c0_30] : memref<1x1x32xf32, #tpu.memory_space<vmem>>, vector<1x1x32xf32>
    %69 = vector.shape_cast %68 : vector<1x1x32xf32> to vector<1x32xf32>
    %c0_31 = arith.constant 0 : index
    %c0_32 = arith.constant 0 : index
    %c0_33 = arith.constant 0 : index
    %70 = vector.load %arg9[%c0_31, %c0_32, %c0_33] : memref<1x1x32xf32, #tpu.memory_space<vmem>>, vector<1x1x32xf32>
    %71 = vector.shape_cast %70 : vector<1x1x32xf32> to vector<1x32xf32>
    %cst_34 = arith.constant dense<0.000000e+00> : vector<2x8xf32>
    %72 = vector.multi_reduction <add>, %67, %cst_34 [2] : vector<2x8x32xf32> to vector<2x8xf32>
    %73 = vector.shape_cast %72 : vector<2x8xf32> to vector<2x8x1xf32>
    %cst_35 = arith.constant 3.200000e+01 : f32
    %74 = vector.broadcast %cst_35 : f32 to vector<2x8x1xf32>
    %75 = arith.divf %73, %74 : vector<2x8x1xf32>
    %76 = vector.broadcast %75 : vector<2x8x1xf32> to vector<2x8x32xf32>
    %77 = arith.subf %67, %76 : vector<2x8x32xf32>
    %78 = arith.mulf %77, %77 : vector<2x8x32xf32>
    %cst_36 = arith.constant dense<0.000000e+00> : vector<2x8xf32>
    %79 = vector.multi_reduction <add>, %78, %cst_36 [2] : vector<2x8x32xf32> to vector<2x8xf32>
    %80 = vector.shape_cast %79 : vector<2x8xf32> to vector<2x8x1xf32>
    %cst_37 = arith.constant 3.200000e+01 : f32
    %81 = vector.broadcast %cst_37 : f32 to vector<2x8x1xf32>
    %82 = arith.divf %80, %81 : vector<2x8x1xf32>
    %83 = vector.broadcast %75 : vector<2x8x1xf32> to vector<2x8x32xf32>
    %84 = arith.subf %67, %83 : vector<2x8x32xf32>
    %cst_38 = arith.constant 9.99999997E-7 : f32
    %85 = vector.broadcast %cst_38 : f32 to vector<2x8x1xf32>
    %86 = arith.addf %82, %85 : vector<2x8x1xf32>
    %87 = math.rsqrt %86 : vector<2x8x1xf32>
    %88 = vector.broadcast %87 : vector<2x8x1xf32> to vector<2x8x32xf32>
    %89 = arith.mulf %84, %88 : vector<2x8x32xf32>
    %90 = vector.shape_cast %69 : vector<1x32xf32> to vector<1x1x32xf32>
    %91 = vector.broadcast %90 : vector<1x1x32xf32> to vector<2x8x32xf32>
    %92 = arith.mulf %89, %91 : vector<2x8x32xf32>
    %93 = vector.shape_cast %71 : vector<1x32xf32> to vector<1x1x32xf32>
    %94 = vector.broadcast %93 : vector<1x1x32xf32> to vector<2x8x32xf32>
    %95 = arith.addf %92, %94 : vector<2x8x32xf32>
    %c0_39 = arith.constant 0 : index
    %c0_40 = arith.constant 0 : index
    %c0_41 = arith.constant 0 : index
    %96 = vector.load %arg10[%c0_39, %c0_40, %c0_41] : memref<1x32x64xbf16, #tpu.memory_space<vmem>>, vector<1x32x64xbf16>
    %97 = vector.shape_cast %96 : vector<1x32x64xbf16> to vector<32x64xbf16>
    %98 = vector.shape_cast %97 : vector<32x64xbf16> to vector<1x32x64xbf16>
    %99 = vector.shape_cast %98 : vector<1x32x64xbf16> to vector<1x32x64xbf16>
    %100 = vector.broadcast %99 : vector<1x32x64xbf16> to vector<2x32x64xbf16>
    %c0_42 = arith.constant 0 : index
    %c0_43 = arith.constant 0 : index
    %c0_44 = arith.constant 0 : index
    %101 = vector.load %arg12[%c0_42, %c0_43, %c0_44] : memref<1x64x32xbf16, #tpu.memory_space<vmem>>, vector<1x64x32xbf16>
    %102 = vector.shape_cast %101 : vector<1x64x32xbf16> to vector<64x32xbf16>
    %103 = vector.shape_cast %102 : vector<64x32xbf16> to vector<1x64x32xbf16>
    %104 = vector.shape_cast %103 : vector<1x64x32xbf16> to vector<1x64x32xbf16>
    %105 = vector.broadcast %104 : vector<1x64x32xbf16> to vector<2x64x32xbf16>
    %106 = arith.truncf %95 : vector<2x8x32xf32> to vector<2x8x32xbf16>
    "tpu.trace_start"() <{level = 10 : i32, message = "bsd,bdf->bsf"}> : () -> ()
    %cst_45 = arith.constant dense<0.000000e+00> : vector<2x8x64xf32>
    %107 = tpu.matmul %106, %100, %cst_45 {dimension_numbers = #tpu.dot_dimension_numbers<[2], [1], [1], [2], [0, 0, 0, 1, 1, 2], [0], [0]>} : vector<2x8x32xbf16>, vector<2x32x64xbf16>, vector<2x8x64xf32> -> vector<2x8x64xf32>
    "tpu.trace_stop"() : () -> ()
    %c0_46 = arith.constant 0 : index
    %c0_47 = arith.constant 0 : index
    %c0_48 = arith.constant 0 : index
    %108 = vector.load %arg11[%c0_46, %c0_47, %c0_48] : memref<1x1x64xf32, #tpu.memory_space<vmem>>, vector<1x1x64xf32>
    %109 = vector.shape_cast %108 : vector<1x1x64xf32> to vector<1x64xf32>
    %110 = vector.shape_cast %109 : vector<1x64xf32> to vector<1x1x64xf32>
    %111 = vector.broadcast %110 : vector<1x1x64xf32> to vector<2x8x64xf32>
    %112 = arith.addf %107, %111 : vector<2x8x64xf32>
    %cst_49 = arith.constant 0.000000e+00 : f32
    %113 = vector.broadcast %cst_49 : f32 to vector<2x8x64xf32>
    %114 = arith.maximumf %112, %113 : vector<2x8x64xf32>
    %115 = arith.truncf %114 : vector<2x8x64xf32> to vector<2x8x64xbf16>
    "tpu.trace_start"() <{level = 10 : i32, message = "bsf,bfd->bsd"}> : () -> ()
    %cst_50 = arith.constant dense<0.000000e+00> : vector<2x8x32xf32>
    %116 = tpu.matmul %115, %105, %cst_50 {dimension_numbers = #tpu.dot_dimension_numbers<[2], [1], [1], [2], [0, 0, 0, 1, 1, 2], [0], [0]>} : vector<2x8x64xbf16>, vector<2x64x32xbf16>, vector<2x8x32xf32> -> vector<2x8x32xf32>
    "tpu.trace_stop"() : () -> ()
    %c0_51 = arith.constant 0 : index
    %c0_52 = arith.constant 0 : index
    %c0_53 = arith.constant 0 : index
    %117 = vector.load %arg13[%c0_51, %c0_52, %c0_53] : memref<1x1x32xf32, #tpu.memory_space<vmem>>, vector<1x1x32xf32>
    %118 = vector.shape_cast %117 : vector<1x1x32xf32> to vector<1x32xf32>
    %119 = vector.shape_cast %118 : vector<1x32xf32> to vector<1x1x32xf32>
    %120 = vector.broadcast %119 : vector<1x1x32xf32> to vector<2x8x32xf32>
    %121 = arith.addf %116, %120 : vector<2x8x32xf32>
    %122 = arith.addf %95, %121 : vector<2x8x32xf32>
    %c0_54 = arith.constant 0 : index
    %c0_55 = arith.constant 0 : index
    %c0_56 = arith.constant 0 : index
    %123 = vector.load %arg14[%c0_54, %c0_55, %c0_56] : memref<1x1x32xf32, #tpu.memory_space<vmem>>, vector<1x1x32xf32>
    %124 = vector.shape_cast %123 : vector<1x1x32xf32> to vector<1x32xf32>
    %c0_57 = arith.constant 0 : index
    %c0_58 = arith.constant 0 : index
    %c0_59 = arith.constant 0 : index
    %125 = vector.load %arg15[%c0_57, %c0_58, %c0_59] : memref<1x1x32xf32, #tpu.memory_space<vmem>>, vector<1x1x32xf32>
    %126 = vector.shape_cast %125 : vector<1x1x32xf32> to vector<1x32xf32>
    %cst_60 = arith.constant dense<0.000000e+00> : vector<2x8xf32>
    %127 = vector.multi_reduction <add>, %122, %cst_60 [2] : vector<2x8x32xf32> to vector<2x8xf32>
    %128 = vector.shape_cast %127 : vector<2x8xf32> to vector<2x8x1xf32>
    %cst_61 = arith.constant 3.200000e+01 : f32
    %129 = vector.broadcast %cst_61 : f32 to vector<2x8x1xf32>
    %130 = arith.divf %128, %129 : vector<2x8x1xf32>
    %131 = vector.broadcast %130 : vector<2x8x1xf32> to vector<2x8x32xf32>
    %132 = arith.subf %122, %131 : vector<2x8x32xf32>
    %133 = arith.mulf %132, %132 : vector<2x8x32xf32>
    %cst_62 = arith.constant dense<0.000000e+00> : vector<2x8xf32>
    %134 = vector.multi_reduction <add>, %133, %cst_62 [2] : vector<2x8x32xf32> to vector<2x8xf32>
    %135 = vector.shape_cast %134 : vector<2x8xf32> to vector<2x8x1xf32>
    %cst_63 = arith.constant 3.200000e+01 : f32
    %136 = vector.broadcast %cst_63 : f32 to vector<2x8x1xf32>
    %137 = arith.divf %135, %136 : vector<2x8x1xf32>
    %138 = vector.broadcast %130 : vector<2x8x1xf32> to vector<2x8x32xf32>
    %139 = arith.subf %122, %138 : vector<2x8x32xf32>
    %cst_64 = arith.constant 9.99999997E-7 : f32
    %140 = vector.broadcast %cst_64 : f32 to vector<2x8x1xf32>
    %141 = arith.addf %137, %140 : vector<2x8x1xf32>
    %142 = math.rsqrt %141 : vector<2x8x1xf32>
    %143 = vector.broadcast %142 : vector<2x8x1xf32> to vector<2x8x32xf32>
    %144 = arith.mulf %139, %143 : vector<2x8x32xf32>
    %145 = vector.shape_cast %124 : vector<1x32xf32> to vector<1x1x32xf32>
    %146 = vector.broadcast %145 : vector<1x1x32xf32> to vector<2x8x32xf32>
    %147 = arith.mulf %144, %146 : vector<2x8x32xf32>
    %148 = vector.shape_cast %126 : vector<1x32xf32> to vector<1x1x32xf32>
    %149 = vector.broadcast %148 : vector<1x1x32xf32> to vector<2x8x32xf32>
    %150 = arith.addf %147, %149 : vector<2x8x32xf32>
    %c0_65 = arith.constant 0 : index
    %c0_66 = arith.constant 0 : index
    %c0_67 = arith.constant 0 : index
    %151 = vector.load %arg16[%c0_65, %c0_66, %c0_67] : memref<2x8x32xf32, #tpu.memory_space<vmem>>, vector<2x8x32xf32>
    tpu.vector_store %arg16[%c0_65, %c0_66, %c0_67], %150 {strides = array<i32>} : memref<2x8x32xf32, #tpu.memory_space<vmem>>, vector<2x8x32xf32>,
    return
  }
  func.func @transform_0(%arg0: i32, %arg1: i32) -> (i32, i32, i32) {
    %c0_i32 = arith.constant 0 : i32
    %c0_i32_0 = arith.constant 0 : i32
    %c0_i32_1 = arith.constant 0 : i32
    return %arg0, %c0_i32, %c0_i32_0 : i32, i32, i32
  }
  func.func @transform_1(%arg0: i32, %arg1: i32) -> (i32, i32, i32) {
    %c0_i32 = arith.constant 0 : i32
    %c0_i32_0 = arith.constant 0 : i32
    %c0_i32_1 = arith.constant 0 : i32
    return %arg0, %c0_i32, %c0_i32_0 : i32, i32, i32
  }
  func.func @transform_2(%arg0: i32, %arg1: i32) -> (i32, i32, i32, i32) {
    %c0_i32 = arith.constant 0 : i32
    %c0_i32_0 = arith.constant 0 : i32
    %c0_i32_1 = arith.constant 0 : i32
    %c0_i32_2 = arith.constant 0 : i32
    return %arg1, %c0_i32, %c0_i32_0, %c0_i32_1 : i32, i32, i32, i32
  }
  func.func @transform_3(%arg0: i32, %arg1: i32) -> (i32, i32, i32, i32) {
    %c0_i32 = arith.constant 0 : i32
    %c0_i32_0 = arith.constant 0 : i32
    %c0_i32_1 = arith.constant 0 : i32
    %c0_i32_2 = arith.constant 0 : i32
    return %arg1, %c0_i32, %c0_i32_0, %c0_i32_1 : i32, i32, i32, i32
  }
  func.func @transform_4(%arg0: i32, %arg1: i32) -> (i32, i32, i32, i32) {
    %c0_i32 = arith.constant 0 : i32
    %c0_i32_0 = arith.constant 0 : i32
    %c0_i32_1 = arith.constant 0 : i32
    %c0_i32_2 = arith.constant 0 : i32
    return %arg1, %c0_i32, %c0_i32_0, %c0_i32_1 : i32, i32, i32, i32
  }
  func.func @transform_5(%arg0: i32, %arg1: i32) -> (i32, i32, i32) {
    %c0_i32 = arith.constant 0 : i32
    %c0_i32_0 = arith.constant 0 : i32
    %c0_i32_1 = arith.constant 0 : i32
    return %arg1, %c0_i32, %c0_i32_0 : i32, i32, i32
  }
  func.func @transform_6(%arg0: i32, %arg1: i32) -> (i32, i32, i32) {
    %c0_i32 = arith.constant 0 : i32
    %c0_i32_0 = arith.constant 0 : i32
    %c0_i32_1 = arith.constant 0 : i32
    return %arg1, %c0_i32, %c0_i32_0 : i32, i32, i32
  }
  func.func @transform_7(%arg0: i32, %arg1: i32) -> (i32, i32, i32) {
    %c0_i32 = arith.constant 0 : i32
    %c0_i32_0 = arith.constant 0 : i32
    %c0_i32_1 = arith.constant 0 : i32
    return %arg1, %c0_i32, %c0_i32_0 : i32, i32, i32
  }
  func.func @transform_8(%arg0: i32, %arg1: i32) -> (i32, i32, i32) {
    %c0_i32 = arith.constant 0 : i32
    %c0_i32_0 = arith.constant 0 : i32
    %c0_i32_1 = arith.constant 0 : i32
    return %arg1, %c0_i32, %c0_i32_0 : i32, i32, i32
  }
  func.func @transform_9(%arg0: i32, %arg1: i32) -> (i32, i32, i32) {
    %c0_i32 = arith.constant 0 : i32
    %c0_i32_0 = arith.constant 0 : i32
    %c0_i32_1 = arith.constant 0 : i32
    return %arg1, %c0_i32, %c0_i32_0 : i32, i32, i32
  }
  func.func @transform_10(%arg0: i32, %arg1: i32) -> (i32, i32, i32) {
    %c0_i32 = arith.constant 0 : i32
    %c0_i32_0 = arith.constant 0 : i32
    %c0_i32_1 = arith.constant 0 : i32
    return %arg1, %c0_i32, %c0_i32_0 : i32, i32, i32
  }
  func.func @transform_11(%arg0: i32, %arg1: i32) -> (i32, i32, i32) {
    %c0_i32 = arith.constant 0 : i32
    %c0_i32_0 = arith.constant 0 : i32
    %c0_i32_1 = arith.constant 0 : i32
    return %arg1, %c0_i32, %c0_i32_0 : i32, i32, i32
  }
  func.func @transform_12(%arg0: i32, %arg1: i32) -> (i32, i32, i32) {
    %c0_i32 = arith.constant 0 : i32
    %c0_i32_0 = arith.constant 0 : i32
    %c0_i32_1 = arith.constant 0 : i32
    return %arg1, %c0_i32, %c0_i32_0 : i32, i32, i32
  }
  func.func @transform_13(%arg0: i32, %arg1: i32) -> (i32, i32, i32) {
    %c0_i32 = arith.constant 0 : i32
    %c0_i32_0 = arith.constant 0 : i32
    %c0_i32_1 = arith.constant 0 : i32
    return %arg1, %c0_i32, %c0_i32_0 : i32, i32, i32
  }
  func.func @transform_14(%arg0: i32, %arg1: i32) -> (i32, i32, i32) {
    %c0_i32 = arith.constant 0 : i32
    %c0_i32_0 = arith.constant 0 : i32
    %c0_i32_1 = arith.constant 0 : i32
    return %arg0, %c0_i32, %c0_i32_0 : i32, i32, i32
  }
}

</mosaic_0001>

<llo_original>
// kernel: encoder_forward.1
$region0: #{encoder_forward.1}
  #allocation0 [shape = 'u32[]', space=smem, size = 0x4, offset = 0x4, fixed_abs, tag = 'smem constant byte address 0x4 - core index']
  #allocation1 [shape = 'u32[72,128]{1,0:T(1,128)}', space=vmem, size = 0x9000, scoped, tag = 'internal scratch']
  %s0 = inlined_call_operand.vmem [shape: f32[2,8,32], index: 0, kind: input, shape index: {}]
  %s1 = inlined_call_operand.vmem [shape: f32[2,1,8], index: 1, kind: input, shape index: {}]
  %s2 = inlined_call_operand.vmem [shape: bf16[2,4,32,24], index: 2, kind: input, shape index: {}]
  %s3 = inlined_call_operand.vmem [shape: f32[2,4,1,24], index: 3, kind: input, shape index: {}]
  %s4 = inlined_call_operand.vmem [shape: bf16[2,4,8,32], index: 4, kind: input, shape index: {}]
  %s5 = inlined_call_operand.vmem [shape: f32[2,1,32], index: 5, kind: input, shape index: {}]
  %s6 = inlined_call_operand.vmem [shape: f32[2,1,32], index: 6, kind: input, shape index: {}]
  %s7 = inlined_call_operand.vmem [shape: f32[2,1,32], index: 7, kind: input, shape index: {}]
  %s8 = inlined_call_operand.vmem [shape: bf16[2,32,64], index: 8, kind: input, shape index: {}]
  %s9 = inlined_call_operand.vmem [shape: f32[2,1,64], index: 9, kind: input, shape index: {}]
  %s10 = inlined_call_operand.vmem [shape: bf16[2,64,32], index: 10, kind: input, shape index: {}]
  %s11 = inlined_call_operand.vmem [shape: f32[2,1,32], index: 11, kind: input, shape index: {}]
  %s12 = inlined_call_operand.vmem [shape: f32[2,1,32], index: 12, kind: input, shape index: {}]
  %s13 = inlined_call_operand.vmem [shape: f32[2,1,32], index: 13, kind: input, shape index: {}]
  %s14 = inlined_call_operand.hbm [shape: f32[2,8,32], index: 14, kind: output, shape index: {}]
  %s15 = sld [smem:[#allocation0]]
  $region93: #{encoder_forward.1} parent=0
    _
  %s17 = ssub.s32 1, %s15
  %s18 = scalar_select 0, %s17, %s15
  $region1: #{encoder_forward.1} parent=0
    #allocation2 [shape = 'u8[8192]{0}', space=vmem, size = 0x2000, scoped, tag = 'output window, operand 0, single buffered']
    #allocation3 [shape = 's32[2]{0}', space=sflag, size = 0x8, scoped, tag = 'scoped memory for encoder_forward.1']
    %19 = vsyncpa [#allocation3], 0
    loop: start=0, step=1, limit=4
    $region2: #{encoder_forward.1} parent=1 // loop_pre_header
      _
    $region3: #{encoder_forward.1} parent=1 // loop_header
      %s21 = sphi 0, %s25
      %p22 = scmp.ge.s32.totalorder %s21, 4
      %s28 = sphi 0, %s40
      %s29 = sphi 0, %s36
      %s30 = sphi 0, %s28
      %s31 = sphi 0, %s29
      %s32 = sphi 0, %s30
      %s33 = sphi 0, %s31
      %s43 = sphi 0, %s45
      %s46 = sphi 0, %s43
      %s47 = sphi 0, %s46
      %s63 = sphi 0, %s47
      %s69 = sphi 0, %s71
      %s72 = sphi 0, %s69
      %s73 = sphi 0, %s72
      %s89 = sphi 0, %s73
      %s95 = sphi 0, %s97
      %s98 = sphi 0, %s95
      %s99 = sphi 0, %s98
      %s115 = sphi 0, %s99
      %s121 = sphi 0, %s123
      %s124 = sphi 0, %s121
      %s125 = sphi 0, %s124
      %s141 = sphi 0, %s125
      %s147 = sphi 0, %s149
      %s150 = sphi 0, %s147
      %s151 = sphi 0, %s150
      %s167 = sphi 0, %s151
      %s173 = sphi 0, %s175
      %s176 = sphi 0, %s173
      %s177 = sphi 0, %s176
      %s193 = sphi 0, %s177
      %s199 = sphi 0, %s201
      %s202 = sphi 0, %s199
      %s203 = sphi 0, %s202
      %s219 = sphi 0, %s203
      %s225 = sphi 0, %s227
      %s228 = sphi 0, %s225
      %s229 = sphi 0, %s228
      %s245 = sphi 0, %s229
      %s251 = sphi 0, %s253
      %s254 = sphi 0, %s251
      %s255 = sphi 0, %s254
      %s271 = sphi 0, %s255
      %s277 = sphi 0, %s279
      %s280 = sphi 0, %s277
      %s281 = sphi 0, %s280
      %s297 = sphi 0, %s281
      %s303 = sphi 0, %s305
      %s306 = sphi 0, %s303
      %s307 = sphi 0, %s306
      %s323 = sphi 0, %s307
      %s329 = sphi 0, %s331
      %s332 = sphi 0, %s329
      %s333 = sphi 0, %s332
      %s349 = sphi 0, %s333
      %s355 = sphi 0, %s357
      %s358 = sphi 0, %s355
      %s359 = sphi 0, %s358
      %s375 = sphi 0, %s359
      %s381 = sphi 0, %s383
      %s384 = sphi 0, %s381
      %s385 = sphi 0, %s384
      %s401 = sphi 0, %s385
      %s407 = sphi 0, %s409
      %s410 = sphi 0, %s407
      %s411 = sphi 0, %s410
      %s427 = sphi 0, %s411
    $region4: #{encoder_forward.1} parent=1 // loop_header_branch
      %24 = sbr.rel (%p22) target = $region8
    $region5: #{encoder_forward.1} parent=1 // loop_body
      %s26 = ssub.s32 %s21, 1
      %s27 = ssub.s32 %s21, 2
      %s34 = sadd.s32 1, %s29
      %p35 = scmp.ge.s32.totalorder %s34, 2
      %s36 = scalar_select %p35, 0, %s34
      %s37 = sadd.s32 1, %s28
      %s38 = scalar_select %p35, %s37, %s28
      %p39 = scmp.ge.s32.totalorder %s38, 1
      %s40 = scalar_select %p39, 0, %s38
      %s41 = ssub.s32 %s28, %s40
      %p42 = scmp.eq.s32.totalorder %s41, 0
      %s44 = sadd.s32 %s43, 1
      %s45 = scalar_select %p42, %s43, %s44
      %p48 = pneg %p42
      %p49 = scmp.eq.s32.totalorder %s21, 1
      %p50 = por %p48, %p49
      %p51 = scmp.ne.s32.totalorder %s43, %s46
      %p52 = scmp.eq.s32.totalorder %s21, 0
      %p53 = por %p51, %p52
      %p54 = scmp.ne.s32.totalorder %s43, %s46
      %p55 = scmp.eq.s32.totalorder %s26, 1
      %p56 = por %p54, %p55
      %p57 = scmp.ne.s32.totalorder %s46, %s47
      %p58 = scmp.eq.s32.totalorder %s26, 0
      %p59 = por %p57, %p58
      %p60 = scmp.ne.s32.totalorder %s46, %s47
      %p61 = scmp.eq.s32.totalorder %s27, 1
      %p62 = por %p60, %p61
      %p64 = scmp.ne.s32.totalorder %s47, %s63
      %p65 = scmp.eq.s32.totalorder %s27, 0
      %p66 = por %p64, %p65
      %s67 = ssub.s32 %s28, %s40
      %p68 = scmp.eq.s32.totalorder %s67, 0
      %s70 = sadd.s32 %s69, 1
      %s71 = scalar_select %p68, %s69, %s70
      %p74 = pneg %p68
      %p75 = scmp.eq.s32.totalorder %s21, 1
      %p76 = por %p74, %p75
      %p77 = scmp.ne.s32.totalorder %s69, %s72
      %p78 = scmp.eq.s32.totalorder %s21, 0
      %p79 = por %p77, %p78
      %p80 = scmp.ne.s32.totalorder %s69, %s72
      %p81 = scmp.eq.s32.totalorder %s26, 1
      %p82 = por %p80, %p81
      %p83 = scmp.ne.s32.totalorder %s72, %s73
      %p84 = scmp.eq.s32.totalorder %s26, 0
      %p85 = por %p83, %p84
      %p86 = scmp.ne.s32.totalorder %s72, %s73
      %p87 = scmp.eq.s32.totalorder %s27, 1
      %p88 = por %p86, %p87
      %p90 = scmp.ne.s32.totalorder %s73, %s89
      %p91 = scmp.eq.s32.totalorder %s27, 0
      %p92 = por %p90, %p91
      %s93 = ssub.s32 %s29, %s36
      %p94 = scmp.eq.s32.totalorder %s93, 0
      %s96 = sadd.s32 %s95, 1
      %s97 = scalar_select %p94, %s95, %s96
      %p100 = pneg %p94
      %p101 = scmp.eq.s32.totalorder %s21, 1
      %p102 = por %p100, %p101
      %p103 = scmp.ne.s32.totalorder %s95, %s98
      %p104 = scmp.eq.s32.totalorder %s21, 0
      %p105 = por %p103, %p104
      %p106 = scmp.ne.s32.totalorder %s95, %s98
      %p107 = scmp.eq.s32.totalorder %s26, 1
      %p108 = por %p106, %p107
      %p109 = scmp.ne.s32.totalorder %s98, %s99
      %p110 = scmp.eq.s32.totalorder %s26, 0
      %p111 = por %p109, %p110
      %p112 = scmp.ne.s32.totalorder %s98, %s99
      %p113 = scmp.eq.s32.totalorder %s27, 1
      %p114 = por %p112, %p113
      %p116 = scmp.ne.s32.totalorder %s99, %s115
      %p117 = scmp.eq.s32.totalorder %s27, 0
      %p118 = por %p116, %p117
      %s119 = ssub.s32 %s29, %s36
      %p120 = scmp.eq.s32.totalorder %s119, 0
      %s122 = sadd.s32 %s121, 1
      %s123 = scalar_select %p120, %s121, %s122
      %p126 = pneg %p120
      %p127 = scmp.eq.s32.totalorder %s21, 1
      %p128 = por %p126, %p127
      %p129 = scmp.ne.s32.totalorder %s121, %s124
      %p130 = scmp.eq.s32.totalorder %s21, 0
      %p131 = por %p129, %p130
      %p132 = scmp.ne.s32.totalorder %s121, %s124
      %p133 = scmp.eq.s32.totalorder %s26, 1
      %p134 = por %p132, %p133
      %p135 = scmp.ne.s32.totalorder %s124, %s125
      %p136 = scmp.eq.s32.totalorder %s26, 0
      %p137 = por %p135, %p136
      %p138 = scmp.ne.s32.totalorder %s124, %s125
      %p139 = scmp.eq.s32.totalorder %s27, 1
      %p140 = por %p138, %p139
      %p142 = scmp.ne.s32.totalorder %s125, %s141
      %p143 = scmp.eq.s32.totalorder %s27, 0
      %p144 = por %p142, %p143
      %s145 = ssub.s32 %s29, %s36
      %p146 = scmp.eq.s32.totalorder %s145, 0
      %s148 = sadd.s32 %s147, 1
      %s149 = scalar_select %p146, %s147, %s148
      %p152 = pneg %p146
      %p153 = scmp.eq.s32.totalorder %s21, 1
      %p154 = por %p152, %p153
      %p155 = scmp.ne.s32.totalorder %s147, %s150
      %p156 = scmp.eq.s32.totalorder %s21, 0
      %p157 = por %p155, %p156
      %p158 = scmp.ne.s32.totalorder %s147, %s150
      %p159 = scmp.eq.s32.totalorder %s26, 1
      %p160 = por %p158, %p159
      %p161 = scmp.ne.s32.totalorder %s150, %s151
      %p162 = scmp.eq.s32.totalorder %s26, 0
      %p163 = por %p161, %p162
      %p164 = scmp.ne.s32.totalorder %s150, %s151
      %p165 = scmp.eq.s32.totalorder %s27, 1
      %p166 = por %p164, %p165
      %p168 = scmp.ne.s32.totalorder %s151, %s167
      %p169 = scmp.eq.s32.totalorder %s27, 0
      %p170 = por %p168, %p169
      %s171 = ssub.s32 %s29, %s36
      %p172 = scmp.eq.s32.totalorder %s171, 0
      %s174 = sadd.s32 %s173, 1
      %s175 = scalar_select %p172, %s173, %s174
      %p178 = pneg %p172
      %p179 = scmp.eq.s32.totalorder %s21, 1
      %p180 = por %p178, %p179
      %p181 = scmp.ne.s32.totalorder %s173, %s176
      %p182 = scmp.eq.s32.totalorder %s21, 0
      %p183 = por %p181, %p182
      %p184 = scmp.ne.s32.totalorder %s173, %s176
      %p185 = scmp.eq.s32.totalorder %s26, 1
      %p186 = por %p184, %p185
      %p187 = scmp.ne.s32.totalorder %s176, %s177
      %p188 = scmp.eq.s32.totalorder %s26, 0
      %p189 = por %p187, %p188
      %p190 = scmp.ne.s32.totalorder %s176, %s177
      %p191 = scmp.eq.s32.totalorder %s27, 1
      %p192 = por %p190, %p191
      %p194 = scmp.ne.s32.totalorder %s177, %s193
      %p195 = scmp.eq.s32.totalorder %s27, 0
      %p196 = por %p194, %p195
      %s197 = ssub.s32 %s29, %s36
      %p198 = scmp.eq.s32.totalorder %s197, 0
      %s200 = sadd.s32 %s199, 1
      %s201 = scalar_select %p198, %s199, %s200
      %p204 = pneg %p198
      %p205 = scmp.eq.s32.totalorder %s21, 1
      %p206 = por %p204, %p205
      %p207 = scmp.ne.s32.totalorder %s199, %s202
      %p208 = scmp.eq.s32.totalorder %s21, 0
      %p209 = por %p207, %p208
      %p210 = scmp.ne.s32.totalorder %s199, %s202
      %p211 = scmp.eq.s32.totalorder %s26, 1
      %p212 = por %p210, %p211
      %p213 = scmp.ne.s32.totalorder %s202, %s203
      %p214 = scmp.eq.s32.totalorder %s26, 0
      %p215 = por %p213, %p214
      %p216 = scmp.ne.s32.totalorder %s202, %s203
      %p217 = scmp.eq.s32.totalorder %s27, 1
      %p218 = por %p216, %p217
      %p220 = scmp.ne.s32.totalorder %s203, %s219
      %p221 = scmp.eq.s32.totalorder %s27, 0
      %p222 = por %p220, %p221
      %s223 = ssub.s32 %s29, %s36
      %p224 = scmp.eq.s32.totalorder %s223, 0
      %s226 = sadd.s32 %s225, 1
      %s227 = scalar_select %p224, %s225, %s226
      %p230 = pneg %p224
      %p231 = scmp.eq.s32.totalorder %s21, 1
      %p232 = por %p230, %p231
      %p233 = scmp.ne.s32.totalorder %s225, %s228
      %p234 = scmp.eq.s32.totalorder %s21, 0
      %p235 = por %p233, %p234
      %p236 = scmp.ne.s32.totalorder %s225, %s228
      %p237 = scmp.eq.s32.totalorder %s26, 1
      %p238 = por %p236, %p237
      %p239 = scmp.ne.s32.totalorder %s228, %s229
      %p240 = scmp.eq.s32.totalorder %s26, 0
      %p241 = por %p239, %p240
      %p242 = scmp.ne.s32.totalorder %s228, %s229
      %p243 = scmp.eq.s32.totalorder %s27, 1
      %p244 = por %p242, %p243
      %p246 = scmp.ne.s32.totalorder %s229, %s245
      %p247 = scmp.eq.s32.totalorder %s27, 0
      %p248 = por %p246, %p247
      %s249 = ssub.s32 %s29, %s36
      %p250 = scmp.eq.s32.totalorder %s249, 0
      %s252 = sadd.s32 %s251, 1
      %s253 = scalar_select %p250, %s251, %s252
      %p256 = pneg %p250
      %p257 = scmp.eq.s32.totalorder %s21, 1
      %p258 = por %p256, %p257
      %p259 = scmp.ne.s32.totalorder %s251, %s254
      %p260 = scmp.eq.s32.totalorder %s21, 0
      %p261 = por %p259, %p260
      %p262 = scmp.ne.s32.totalorder %s251, %s254
      %p263 = scmp.eq.s32.totalorder %s26, 1
      %p264 = por %p262, %p263
      %p265 = scmp.ne.s32.totalorder %s254, %s255
      %p266 = scmp.eq.s32.totalorder %s26, 0
      %p267 = por %p265, %p266
      %p268 = scmp.ne.s32.totalorder %s254, %s255
      %p269 = scmp.eq.s32.totalorder %s27, 1
      %p270 = por %p268, %p269
      %p272 = scmp.ne.s32.totalorder %s255, %s271
      %p273 = scmp.eq.s32.totalorder %s27, 0
      %p274 = por %p272, %p273
      %s275 = ssub.s32 %s29, %s36
      %p276 = scmp.eq.s32.totalorder %s275, 0
      %s278 = sadd.s32 %s277, 1
      %s279 = scalar_select %p276, %s277, %s278
      %p282 = pneg %p276
      %p283 = scmp.eq.s32.totalorder %s21, 1
      %p284 = por %p282, %p283
      %p285 = scmp.ne.s32.totalorder %s277, %s280
      %p286 = scmp.eq.s32.totalorder %s21, 0
      %p287 = por %p285, %p286
      %p288 = scmp.ne.s32.totalorder %s277, %s280
      %p289 = scmp.eq.s32.totalorder %s26, 1
      %p290 = por %p288, %p289
      %p291 = scmp.ne.s32.totalorder %s280, %s281
      %p292 = scmp.eq.s32.totalorder %s26, 0
      %p293 = por %p291, %p292
      %p294 = scmp.ne.s32.totalorder %s280, %s281
      %p295 = scmp.eq.s32.totalorder %s27, 1
      %p296 = por %p294, %p295
      %p298 = scmp.ne.s32.totalorder %s281, %s297
      %p299 = scmp.eq.s32.totalorder %s27, 0
      %p300 = por %p298, %p299
      %s301 = ssub.s32 %s29, %s36
      %p302 = scmp.eq.s32.totalorder %s301, 0
      %s304 = sadd.s32 %s303, 1
      %s305 = scalar_select %p302, %s303, %s304
      %p308 = pneg %p302
      %p309 = scmp.eq.s32.totalorder %s21, 1
      %p310 = por %p308, %p309
      %p311 = scmp.ne.s32.totalorder %s303, %s306
      %p312 = scmp.eq.s32.totalorder %s21, 0
      %p313 = por %p311, %p312
      %p314 = scmp.ne.s32.totalorder %s303, %s306
      %p315 = scmp.eq.s32.totalorder %s26, 1
      %p316 = por %p314, %p315
      %p317 = scmp.ne.s32.totalorder %s306, %s307
      %p318 = scmp.eq.s32.totalorder %s26, 0
      %p319 = por %p317, %p318
      %p320 = scmp.ne.s32.totalorder %s306, %s307
      %p321 = scmp.eq.s32.totalorder %s27, 1
      %p322 = por %p320, %p321
      %p324 = scmp.ne.s32.totalorder %s307, %s323
      %p325 = scmp.eq.s32.totalorder %s27, 0
      %p326 = por %p324, %p325
      %s327 = ssub.s32 %s29, %s36
      %p328 = scmp.eq.s32.totalorder %s327, 0
      %s330 = sadd.s32 %s329, 1
      %s331 = scalar_select %p328, %s329, %s330
      %p334 = pneg %p328
      %p335 = scmp.eq.s32.totalorder %s21, 1
      %p336 = por %p334, %p335
      %p337 = scmp.ne.s32.totalorder %s329, %s332
      %p338 = scmp.eq.s32.totalorder %s21, 0
      %p339 = por %p337, %p338
      %p340 = scmp.ne.s32.totalorder %s329, %s332
      %p341 = scmp.eq.s32.totalorder %s26, 1
      %p342 = por %p340, %p341
      %p343 = scmp.ne.s32.totalorder %s332, %s333
      %p344 = scmp.eq.s32.totalorder %s26, 0
      %p345 = por %p343, %p344
      %p346 = scmp.ne.s32.totalorder %s332, %s333
      %p347 = scmp.eq.s32.totalorder %s27, 1
      %p348 = por %p346, %p347
      %p350 = scmp.ne.s32.totalorder %s333, %s349
      %p351 = scmp.eq.s32.totalorder %s27, 0
      %p352 = por %p350, %p351
      %s353 = ssub.s32 %s29, %s36
      %p354 = scmp.eq.s32.totalorder %s353, 0
      %s356 = sadd.s32 %s355, 1
      %s357 = scalar_select %p354, %s355, %s356
      %p360 = pneg %p354
      %p361 = scmp.eq.s32.totalorder %s21, 1
      %p362 = por %p360, %p361
      %p363 = scmp.ne.s32.totalorder %s355, %s358
      %p364 = scmp.eq.s32.totalorder %s21, 0
      %p365 = por %p363, %p364
      %p366 = scmp.ne.s32.totalorder %s355, %s358
      %p367 = scmp.eq.s32.totalorder %s26, 1
      %p368 = por %p366, %p367
      %p369 = scmp.ne.s32.totalorder %s358, %s359
      %p370 = scmp.eq.s32.totalorder %s26, 0
      %p371 = por %p369, %p370
      %p372 = scmp.ne.s32.totalorder %s358, %s359
      %p373 = scmp.eq.s32.totalorder %s27, 1
      %p374 = por %p372, %p373
      %p376 = scmp.ne.s32.totalorder %s359, %s375
      %p377 = scmp.eq.s32.totalorder %s27, 0
      %p378 = por %p376, %p377
      %s379 = ssub.s32 %s29, %s36
      %p380 = scmp.eq.s32.totalorder %s379, 0
      %s382 = sadd.s32 %s381, 1
      %s383 = scalar_select %p380, %s381, %s382
      %p386 = pneg %p380
      %p387 = scmp.eq.s32.totalorder %s21, 1
      %p388 = por %p386, %p387
      %p389 = scmp.ne.s32.totalorder %s381, %s384
      %p390 = scmp.eq.s32.totalorder %s21, 0
      %p391 = por %p389, %p390
      %p392 = scmp.ne.s32.totalorder %s381, %s384
      %p393 = scmp.eq.s32.totalorder %s26, 1
      %p394 = por %p392, %p393
      %p395 = scmp.ne.s32.totalorder %s384, %s385
      %p396 = scmp.eq.s32.totalorder %s26, 0
      %p397 = por %p395, %p396
      %p398 = scmp.ne.s32.totalorder %s384, %s385
      %p399 = scmp.eq.s32.totalorder %s27, 1
      %p400 = por %p398, %p399
      %p402 = scmp.ne.s32.totalorder %s385, %s401
      %p403 = scmp.eq.s32.totalorder %s27, 0
      %p404 = por %p402, %p403
      %s405 = ssub.s32 %s28, %s40
      %p406 = scmp.eq.s32.totalorder %s405, 0
      %s408 = sadd.s32 %s407, 1
      %s409 = scalar_select %p406, %s407, %s408
      %p412 = pneg %p406
      %p413 = scmp.eq.s32.totalorder %s21, 1
      %p414 = por %p412, %p413
      %p415 = scmp.ne.s32.totalorder %s407, %s410
      %p416 = scmp.eq.s32.totalorder %s21, 0
      %p417 = por %p415, %p416
      %p418 = scmp.ne.s32.totalorder %s407, %s410
      %p419 = scmp.eq.s32.totalorder %s26, 1
      %p420 = por %p418, %p419
      %p421 = scmp.ne.s32.totalorder %s410, %s411
      %p422 = scmp.eq.s32.totalorder %s26, 0
      %p423 = por %p421, %p422
      %p424 = scmp.ne.s32.totalorder %s410, %s411
      %p425 = scmp.eq.s32.totalorder %s27, 1
      %p426 = por %p424, %p425
      %p428 = scmp.ne.s32.totalorder %s411, %s427
      %p429 = scmp.eq.s32.totalorder %s27, 0
      %p430 = por %p428, %p429
      %p431 = scmp.le.s32.totalorder 1, %s21
      %p432 = scmp.lt.s32.totalorder %s21, 3
      %p433 = pnand %p431, %p432
      %p434 = pneg %p433
      // Predicated region
      $region9: #{encoder_forward.1} parent=5 // pred_check
        _
      $region10: #{encoder_forward.1} parent=5 // pred_check_branch
        %436 = sbr.rel (%p433) target = $region12
      $region11: #{encoder_forward.1} parent=5 // pred_region
        %s437 = ssub.s32 %s21, 1
        // Predicated region
        $region13: #{encoder_forward.1} parent=11 // pred_check
          %p438 = pneg %p59
        $region14: #{encoder_forward.1} parent=11 // pred_check_branch
          %440 = sbr.rel (%p438) target = $region16
        $region15: #{encoder_forward.1} parent=11 // pred_region
          %s441 = smul.u32 2, %s30
          %p442 = scmp.lt.s32.totalorder %s441, 1
          %s443 = scalar_select %p442, %s441, 1
          %s444 = smul.addr %s443, 8
          %s445 = scalar_lea.vmem %s0, %s444
          %s446 = smul.u32 2, %s30
        $region16: #{encoder_forward.1} parent=11 // pred_fallthru
          _
        // Predicated region
        $region17: #{encoder_forward.1} parent=11 // pred_check
          %p447 = pneg %p85
        $region18: #{encoder_forward.1} parent=11 // pred_check_branch
          %449 = sbr.rel (%p447) target = $region20
        $region19: #{encoder_forward.1} parent=11 // pred_region
          %s450 = smul.u32 2, %s30
          %p451 = scmp.lt.s32.totalorder %s450, 1
          %s452 = scalar_select %p451, %s450, 1
          %s453 = scalar_lea.vmem %s1, %s452
          %s454 = smul.u32 2, %s30
        $region20: #{encoder_forward.1} parent=11 // pred_fallthru
          _
      $region12: #{encoder_forward.1} parent=5 // pred_fallthru
        _
      %p455 = scmp.lt.s32.totalorder %s21, 2
      // Predicated region
      $region21: #{encoder_forward.1} parent=5 // pred_check
        %p456 = pneg %p455
      $region22: #{encoder_forward.1} parent=5 // pred_check_branch
        %458 = sbr.rel (%p456) target = $region24
      $region23: #{encoder_forward.1} parent=5 // pred_region
        // Predicated region
        $region25: #{encoder_forward.1} parent=23 // pred_check
          %p459 = pneg %p105
        $region26: #{encoder_forward.1} parent=23 // pred_check_branch
          %461 = sbr.rel (%p459) target = $region28
        $region27: #{encoder_forward.1} parent=23 // pred_region
          %p462 = scmp.lt.s32.totalorder %s29, 1
          %s463 = scalar_select %p462, %s29, 1
          %s464 = smul.addr %s463, 16
          %s465 = smul.addr %s464, 4
          %s466 = scalar_lea.vmem %s2, %s465
        $region28: #{encoder_forward.1} parent=23 // pred_fallthru
          _
        // Predicated region
        $region29: #{encoder_forward.1} parent=23 // pred_check
          %p467 = pneg %p131
        $region30: #{encoder_forward.1} parent=23 // pred_check_branch
          %469 = sbr.rel (%p467) target = $region32
        $region31: #{encoder_forward.1} parent=23 // pred_region
          %p470 = scmp.lt.s32.totalorder %s29, 1
          %s471 = scalar_select %p470, %s29, 1
          %s472 = smul.addr %s471, 4
          %s473 = scalar_lea.vmem %s3, %s472
        $region32: #{encoder_forward.1} parent=23 // pred_fallthru
          _
        // Predicated region
        $region33: #{encoder_forward.1} parent=23 // pred_check
          %p474 = pneg %p157
        $region34: #{encoder_forward.1} parent=23 // pred_check_branch
          %476 = sbr.rel (%p474) target = $region36
        $region35: #{encoder_forward.1} parent=23 // pred_region
          %p477 = scmp.lt.s32.totalorder %s29, 1
          %s478 = scalar_select %p477, %s29, 1
          %s479 = smul.addr %s478, 4
          %s480 = smul.addr %s479, 4
          %s481 = scalar_lea.vmem %s4, %s480
        $region36: #{encoder_forward.1} parent=23 // pred_fallthru
          _
        // Predicated region
        $region37: #{encoder_forward.1} parent=23 // pred_check
          %p482 = pneg %p183
        $region38: #{encoder_forward.1} parent=23 // pred_check_branch
          %484 = sbr.rel (%p482) target = $region40
        $region39: #{encoder_forward.1} parent=23 // pred_region
          %p485 = scmp.lt.s32.totalorder %s29, 1
          %s486 = scalar_select %p485, %s29, 1
          %s487 = scalar_lea.vmem %s5, %s486
        $region40: #{encoder_forward.1} parent=23 // pred_fallthru
          _
        // Predicated region
        $region41: #{encoder_forward.1} parent=23 // pred_check
          %p488 = pneg %p209
        $region42: #{encoder_forward.1} parent=23 // pred_check_branch
          %490 = sbr.rel (%p488) target = $region44
        $region43: #{encoder_forward.1} parent=23 // pred_region
          %p491 = scmp.lt.s32.totalorder %s29, 1
          %s492 = scalar_select %p491, %s29, 1
          %s493 = scalar_lea.vmem %s6, %s492
        $region44: #{encoder_forward.1} parent=23 // pred_fallthru
          _
        // Predicated region
        $region45: #{encoder_forward.1} parent=23 // pred_check
          %p494 = pneg %p235
        $region46: #{encoder_forward.1} parent=23 // pred_check_branch
          %496 = sbr.rel (%p494) target = $region48
        $region47: #{encoder_forward.1} parent=23 // pred_region
          %p497 = scmp.lt.s32.totalorder %s29, 1
          %s498 = scalar_select %p497, %s29, 1
          %s499 = scalar_lea.vmem %s7, %s498
        $region48: #{encoder_forward.1} parent=23 // pred_fallthru
          _
        // Predicated region
        $region49: #{encoder_forward.1} parent=23 // pred_check
          %p500 = pneg %p261
        $region50: #{encoder_forward.1} parent=23 // pred_check_branch
          %502 = sbr.rel (%p500) target = $region52
        $region51: #{encoder_forward.1} parent=23 // pred_region
          %p503 = scmp.lt.s32.totalorder %s29, 1
          %s504 = scalar_select %p503, %s29, 1
          %s505 = smul.addr %s504, 4
          %s506 = smul.addr %s505, 4
          %s507 = scalar_lea.vmem %s8, %s506
        $region52: #{encoder_forward.1} parent=23 // pred_fallthru
          _
        // Predicated region
        $region53: #{encoder_forward.1} parent=23 // pred_check
          %p508 = pneg %p287
        $region54: #{encoder_forward.1} parent=23 // pred_check_branch
          %510 = sbr.rel (%p508) target = $region56
        $region55: #{encoder_forward.1} parent=23 // pred_region
          %p511 = scmp.lt.s32.totalorder %s29, 1
          %s512 = scalar_select %p511, %s29, 1
          %s513 = scalar_lea.vmem %s9, %s512
        $region56: #{encoder_forward.1} parent=23 // pred_fallthru
          _
        // Predicated region
        $region57: #{encoder_forward.1} parent=23 // pred_check
          %p514 = pneg %p313
        $region58: #{encoder_forward.1} parent=23 // pred_check_branch
          %516 = sbr.rel (%p514) target = $region60
        $region59: #{encoder_forward.1} parent=23 // pred_region
          %p517 = scmp.lt.s32.totalorder %s29, 1
          %s518 = scalar_select %p517, %s29, 1
          %s519 = smul.addr %s518, 8
          %s520 = smul.addr %s519, 4
          %s521 = scalar_lea.vmem %s10, %s520
        $region60: #{encoder_forward.1} parent=23 // pred_fallthru
          _
        // Predicated region
        $region61: #{encoder_forward.1} parent=23 // pred_check
          %p522 = pneg %p339
        $region62: #{encoder_forward.1} parent=23 // pred_check_branch
          %524 = sbr.rel (%p522) target = $region64
        $region63: #{encoder_forward.1} parent=23 // pred_region
          %p525 = scmp.lt.s32.totalorder %s29, 1
          %s526 = scalar_select %p525, %s29, 1
          %s527 = scalar_lea.vmem %s11, %s526
        $region64: #{encoder_forward.1} parent=23 // pred_fallthru
          _
        // Predicated region
        $region65: #{encoder_forward.1} parent=23 // pred_check
          %p528 = pneg %p365
        $region66: #{encoder_forward.1} parent=23 // pred_check_branch
          %530 = sbr.rel (%p528) target = $region68
        $region67: #{encoder_forward.1} parent=23 // pred_region
          %p531 = scmp.lt.s32.totalorder %s29, 1
          %s532 = scalar_select %p531, %s29, 1
          %s533 = scalar_lea.vmem %s12, %s532
        $region68: #{encoder_forward.1} parent=23 // pred_fallthru
          _
        // Predicated region
        $region69: #{encoder_forward.1} parent=23 // pred_check
          %p534 = pneg %p391
        $region70: #{encoder_forward.1} parent=23 // pred_check_branch
          %536 = sbr.rel (%p534) target = $region72
        $region71: #{encoder_forward.1} parent=23 // pred_region
          %p537 = scmp.lt.s32.totalorder %s29, 1
          %s538 = scalar_select %p537, %s29, 1
          %s539 = scalar_lea.vmem %s13, %s538
        $region72: #{encoder_forward.1} parent=23 // pred_fallthru
          _
      $region24: #{encoder_forward.1} parent=5 // pred_fallthru
        _
      %p540 = scmp.le.s32.totalorder 1, %s21
      %p541 = scmp.lt.s32.totalorder %s21, 3
      %p542 = pnand %p540, %p541
      %p543 = pneg %p542
      // Predicated region
      $region73: #{encoder_forward.1} parent=5 // pred_check
        _
      $region74: #{encoder_forward.1} parent=5 // pred_check_branch
        %545 = sbr.rel (%p542) target = $region76
      $region75: #{encoder_forward.1} parent=5 // pred_region
        %s546 = ssub.s32 %s21, 1
        %s547 = smul.u32 2, %s30
        %p548 = scmp.lt.s32.totalorder %s547, 1
        %s549 = scalar_select %p548, %s547, 1
        %s550 = smul.addr %s549, 8
        %s551 = scalar_lea.vmem %s0, %s550
        %p552 = pneg %p59
        %p553 = pneg %p56
        %s554 = smul.u32 2, %s30
        %p555 = scmp.lt.s32.totalorder %s554, 1
        %s556 = scalar_select %p555, %s554, 1
        %s557 = scalar_lea.vmem %s1, %s556
        %p558 = pneg %p85
        %p559 = pneg %p82
        %p560 = scmp.lt.s32.totalorder %s31, 1
        %s561 = scalar_select %p560, %s31, 1
        %s562 = smul.addr %s561, 16
        %s563 = smul.addr %s562, 4
        %s564 = scalar_lea.vmem %s2, %s563
        %p565 = pneg %p111
        %p566 = pneg %p108
        %p567 = scmp.lt.s32.totalorder %s31, 1
        %s568 = scalar_select %p567, %s31, 1
        %s569 = smul.addr %s568, 4
        %s570 = scalar_lea.vmem %s3, %s569
        %p571 = pneg %p137
        %p572 = pneg %p134
        %p573 = scmp.lt.s32.totalorder %s31, 1
        %s574 = scalar_select %p573, %s31, 1
        %s575 = smul.addr %s574, 4
        %s576 = smul.addr %s575, 4
        %s577 = scalar_lea.vmem %s4, %s576
        %p578 = pneg %p163
        %p579 = pneg %p160
        %p580 = scmp.lt.s32.totalorder %s31, 1
        %s581 = scalar_select %p580, %s31, 1
        %s582 = scalar_lea.vmem %s5, %s581
        %p583 = pneg %p189
        %p584 = pneg %p186
        %p585 = scmp.lt.s32.totalorder %s31, 1
        %s586 = scalar_select %p585, %s31, 1
        %s587 = scalar_lea.vmem %s6, %s586
        %p588 = pneg %p215
        %p589 = pneg %p212
        %p590 = scmp.lt.s32.totalorder %s31, 1
        %s591 = scalar_select %p590, %s31, 1
        %s592 = scalar_lea.vmem %s7, %s591
        %p593 = pneg %p241
        %p594 = pneg %p238
        %p595 = scmp.lt.s32.totalorder %s31, 1
        %s596 = scalar_select %p595, %s31, 1
        %s597 = smul.addr %s596, 4
        %s598 = smul.addr %s597, 4
        %s599 = scalar_lea.vmem %s8, %s598
        %p600 = pneg %p267
        %p601 = pneg %p264
        %p602 = scmp.lt.s32.totalorder %s31, 1
        %s603 = scalar_select %p602, %s31, 1
        %s604 = scalar_lea.vmem %s9, %s603
        %p605 = pneg %p293
        %p606 = pneg %p290
        %p607 = scmp.lt.s32.totalorder %s31, 1
        %s608 = scalar_select %p607, %s31, 1
        %s609 = smul.addr %s608, 8
        %s610 = smul.addr %s609, 4
        %s611 = scalar_lea.vmem %s10, %s610
        %p612 = pneg %p319
        %p613 = pneg %p316
        %p614 = scmp.lt.s32.totalorder %s31, 1
        %s615 = scalar_select %p614, %s31, 1
        %s616 = scalar_lea.vmem %s11, %s615
        %p617 = pneg %p345
        %p618 = pneg %p342
        %p619 = scmp.lt.s32.totalorder %s31, 1
        %s620 = scalar_select %p619, %s31, 1
        %s621 = scalar_lea.vmem %s12, %s620
        %p622 = pneg %p371
        %p623 = pneg %p368
        %p624 = scmp.lt.s32.totalorder %s31, 1
        %s625 = scalar_select %p624, %s31, 1
        %s626 = scalar_lea.vmem %s13, %s625
        %p627 = pneg %p397
        %p628 = pneg %p394
        %p629 = pneg %p423
        %p630 = pneg %p420
        %s631 = smul.u32 2, %s30
        %p632 = scmp.lt.s32.totalorder %s631, 1
        %s633 = scalar_select %p632, %s631, 1
        %s634 = smul.addr %s633, 8
        %s635 = scalar_lea.vmem %s0, %s634
        %s636 = smul.u32 2, %s30
        %s637 = smul.u32 2, %s30
        %p638 = scmp.lt.s32.totalorder %s637, 1
        %s639 = scalar_select %p638, %s637, 1
        %s640 = scalar_lea.vmem %s1, %s639
        %s641 = smul.u32 2, %s30
        %p642 = scmp.lt.s32.totalorder %s31, 1
        %s643 = scalar_select %p642, %s31, 1
        %s644 = smul.addr %s643, 16
        %s645 = smul.addr %s644, 4
        %s646 = scalar_lea.vmem %s2, %s645
        %p647 = scmp.lt.s32.totalorder %s31, 1
        %s648 = scalar_select %p647, %s31, 1
        %s649 = smul.addr %s648, 4
        %s650 = scalar_lea.vmem %s3, %s649
        %p651 = scmp.lt.s32.totalorder %s31, 1
        %s652 = scalar_select %p651, %s31, 1
        %s653 = smul.addr %s652, 4
        %s654 = smul.addr %s653, 4
        %s655 = scalar_lea.vmem %s4, %s654
        %p656 = scmp.lt.s32.totalorder %s31, 1
        %s657 = scalar_select %p656, %s31, 1
        %s658 = scalar_lea.vmem %s5, %s657
        %p659 = scmp.lt.s32.totalorder %s31, 1
        %s660 = scalar_select %p659, %s31, 1
        %s661 = scalar_lea.vmem %s6, %s660
        %p662 = scmp.lt.s32.totalorder %s31, 1
        %s663 = scalar_select %p662, %s31, 1
        %s664 = scalar_lea.vmem %s7, %s663
        %p665 = scmp.lt.s32.totalorder %s31, 1
        %s666 = scalar_select %p665, %s31, 1
        %s667 = smul.addr %s666, 4
        %s668 = smul.addr %s667, 4
        %s669 = scalar_lea.vmem %s8, %s668
        %p670 = scmp.lt.s32.totalorder %s31, 1
        %s671 = scalar_select %p670, %s31, 1
        %s672 = scalar_lea.vmem %s9, %s671
        %p673 = scmp.lt.s32.totalorder %s31, 1
        %s674 = scalar_select %p673, %s31, 1
        %s675 = smul.addr %s674, 8
        %s676 = smul.addr %s675, 4
        %s677 = scalar_lea.vmem %s10, %s676
        %p678 = scmp.lt.s32.totalorder %s31, 1
        %s679 = scalar_select %p678, %s31, 1
        %s680 = scalar_lea.vmem %s11, %s679
        %p681 = scmp.lt.s32.totalorder %s31, 1
        %s682 = scalar_select %p681, %s31, 1
        %s683 = scalar_lea.vmem %s12, %s682
        %p684 = scmp.lt.s32.totalorder %s31, 1
        %s685 = scalar_select %p684, %s31, 1
        %s686 = scalar_lea.vmem %s13, %s685
        %s687 = smul.u32 2, %s30
        %p689 = scmp.eq.s32.totalorder %s31, 0
        // Predicated region
        $region77: #{encoder_forward.1} parent=75 // pred_check
          %p690 = pneg %p689
        $region78: #{encoder_forward.1} parent=75 // pred_check_branch
          %692 = sbr.rel (%p690) target = $region80
        $region79: #{encoder_forward.1} parent=75 // pred_region
          %v693 = vld [vmem:[%s635] sm:$0xff]
          %v694 = vld [vmem:[%s635 + $0x8] sm:$0xff]
          %vm695 = vcmask 261120
          %696 = vst.msk [vmem:[#allocation2] sm:$0xff] %vm695, %v693
          %697 = vst.msk [vmem:[#allocation2 + $0x8] sm:$0xff] %vm695, %v694
        $region80: #{encoder_forward.1} parent=75 // pred_fallthru
          _
        %v698 = vld [vmem:[#allocation2] sm:$0xff]
        %v699 = vld [vmem:[#allocation2 + $0x8] sm:$0xff]
        %v700 = vld [vmem:[%s646] sm:$0xf]
        %v701 = vld [vmem:[%s646 + $0x4] sm:$0xf]
        %v702 = vld [vmem:[%s646 + $0x8] sm:$0xf]
        %v703 = vld [vmem:[%s646 + $0xc] sm:$0xf]
        %v704 = vld [vmem:[%s646 + $0x10] sm:$0xf]
        %v705 = vld [vmem:[%s646 + $0x14] sm:$0xf]
        %v706 = vld [vmem:[%s646 + $0x18] sm:$0xf]
        %v707 = vld [vmem:[%s646 + $0x1c] sm:$0xf]
        %v708 = vld [vmem:[%s646 + $0x20] sm:$0xf]
        %v709 = vld [vmem:[%s646 + $0x24] sm:$0xf]
        %v710 = vld [vmem:[%s646 + $0x28] sm:$0xf]
        %v711 = vld [vmem:[%s646 + $0x2c] sm:$0xf]
        %v712 = vld [vmem:[%s646 + $0x30] sm:$0xf]
        %v713 = vld [vmem:[%s646 + $0x34] sm:$0xf]
        %v714 = vld [vmem:[%s646 + $0x38] sm:$0xf]
        %v715 = vld [vmem:[%s646 + $0x3c] sm:$0xf]
        %v716 = vld [vmem:[%s650] sm:$0x1]
        %v717 = vld [vmem:[%s650 + $0x1] sm:$0x1]
        %v718 = vld [vmem:[%s650 + $0x2] sm:$0x1]
        %v719 = vld [vmem:[%s650 + $0x3] sm:$0x1]
        %v720 = vpack.c.bf16 %v698, %v698
        %v721 = vpack.c.bf16 %v699, %v699
        %v726 = vperm.slane %v716, 0
        %v727 = vperm.slane %v717, 0
        %v728 = vperm.slane %v718, 0
        %v729 = vperm.slane %v719, 0
        %v738 = vunpack.c.l.b16 %v700
        %v739 = vunpack.c.l.b16 %v701
        %v740 = vunpack.c.l.b16 %v702
        %v741 = vunpack.c.l.b16 %v703
        %v742 = vpack.c.b16 %v739, %v738
        %v743 = vpack.c.b16 %v741, %v740
        %vm746 = vcmask 261120
        %v748 = vsel %vm746, %v720, 0
        %750 = vmatpush.bf16.msra.mxu0 0
        %751 = vmatpush.bf16.msra.mxu0 0
        %752 = vmatpush.bf16.msra.mxu0 0
        %753 = vmatpush.bf16.msra.mxu0 0
        %754 = vmatpush.bf16.msra.mxu0 0
        %755 = vmatpush.bf16.msra.mxu0 0
        %756 = vmatpush.bf16.msra.mxu0 %v743
        %757 = vmatpush.bf16.msra.mxu0 %v742
        %758 = vmatmul.bf16.gmra.mxu0 %v748
        %v759 = vpop.f32.mrf.mxu0
        %v760 = vadd.f32 %v726, %v759
        %v761 = vpop.f32.mrf.mxu0
        %762 = vdwg.mxu0
        %v767 = vunpack.c.l.b16 %v704
        %v768 = vunpack.c.l.b16 %v705
        %v769 = vunpack.c.l.b16 %v706
        %v770 = vunpack.c.l.b16 %v707
        %v771 = vpack.c.b16 %v768, %v767
        %v772 = vpack.c.b16 %v770, %v769
        %775 = vmatpush.bf16.msra.mxu0 0
        %776 = vmatpush.bf16.msra.mxu0 0
        %777 = vmatpush.bf16.msra.mxu0 0
        %778 = vmatpush.bf16.msra.mxu0 0
        %779 = vmatpush.bf16.msra.mxu0 0
        %780 = vmatpush.bf16.msra.mxu0 0
        %781 = vmatpush.bf16.msra.mxu0 %v772
        %782 = vmatpush.bf16.msra.mxu0 %v771
        %783 = vmatmul.bf16.gmra.mxu0 %v748
        %v784 = vpop.f32.mrf.mxu0
        %v785 = vadd.f32 %v727, %v784
        %v786 = vpop.f32.mrf.mxu0
        %787 = vdwg.mxu0
        %v792 = vunpack.c.l.b16 %v708
        %v793 = vunpack.c.l.b16 %v709
        %v794 = vunpack.c.l.b16 %v710
        %v795 = vunpack.c.l.b16 %v711
        %v796 = vpack.c.b16 %v793, %v792
        %v797 = vpack.c.b16 %v795, %v794
        %800 = vmatpush.bf16.msra.mxu0 0
        %801 = vmatpush.bf16.msra.mxu0 0
        %802 = vmatpush.bf16.msra.mxu0 0
        %803 = vmatpush.bf16.msra.mxu0 0
        %804 = vmatpush.bf16.msra.mxu0 0
        %805 = vmatpush.bf16.msra.mxu0 0
        %806 = vmatpush.bf16.msra.mxu0 %v797
        %807 = vmatpush.bf16.msra.mxu0 %v796
        %808 = vmatmul.bf16.gmra.mxu0 %v748
        %v809 = vpop.f32.mrf.mxu0
        %v810 = vadd.f32 %v728, %v809
        %v811 = vpop.f32.mrf.mxu0
        %812 = vdwg.mxu0
        %v817 = vunpack.c.l.b16 %v712
        %v818 = vunpack.c.l.b16 %v713
        %v819 = vunpack.c.l.b16 %v714
        %v820 = vunpack.c.l.b16 %v715
        %v821 = vpack.c.b16 %v818, %v817
        %v822 = vpack.c.b16 %v820, %v819
        %825 = vmatpush.bf16.msra.mxu0 0
        %826 = vmatpush.bf16.msra.mxu0 0
        %827 = vmatpush.bf16.msra.mxu0 0
        %828 = vmatpush.bf16.msra.mxu0 0
        %829 = vmatpush.bf16.msra.mxu0 0
        %830 = vmatpush.bf16.msra.mxu0 0
        %831 = vmatpush.bf16.msra.mxu0 %v822
        %832 = vmatpush.bf16.msra.mxu0 %v821
        %833 = vmatmul.bf16.gmra.mxu0 %v748
        %v834 = vpop.f32.mrf.mxu0
        %v835 = vadd.f32 %v729, %v834
        %v836 = vpop.f32.mrf.mxu0
        %837 = vdwg.mxu0
        %v839 = vsel %vm746, %v721, 0
        %841 = vmatpush.bf16.msra.mxu0 0
        %842 = vmatpush.bf16.msra.mxu0 0
        %843 = vmatpush.bf16.msra.mxu0 0
        %844 = vmatpush.bf16.msra.mxu0 0
        %845 = vmatpush.bf16.msra.mxu0 0
        %846 = vmatpush.bf16.msra.mxu0 0
        %847 = vmatpush.bf16.msra.mxu0 %v743
        %848 = vmatpush.bf16.msra.mxu0 %v742
        %849 = vmatmul.bf16.gmra.mxu0 %v839
        %v850 = vpop.f32.mrf.mxu0
        %v851 = vadd.f32 %v726, %v850
        %v852 = vpop.f32.mrf.mxu0
        %853 = vdwg.mxu0
        %854 = vmatpush.bf16.msra.mxu0 0
        %855 = vmatpush.bf16.msra.mxu0 0
        %856 = vmatpush.bf16.msra.mxu0 0
        %857 = vmatpush.bf16.msra.mxu0 0
        %858 = vmatpush.bf16.msra.mxu0 0
        %859 = vmatpush.bf16.msra.mxu0 0
        %860 = vmatpush.bf16.msra.mxu0 %v772
        %861 = vmatpush.bf16.msra.mxu0 %v771
        %862 = vmatmul.bf16.gmra.mxu0 %v839
        %v863 = vpop.f32.mrf.mxu0
        %v864 = vadd.f32 %v727, %v863
        %v865 = vpop.f32.mrf.mxu0
        %866 = vdwg.mxu0
        %867 = vmatpush.bf16.msra.mxu0 0
        %868 = vmatpush.bf16.msra.mxu0 0
        %869 = vmatpush.bf16.msra.mxu0 0
        %870 = vmatpush.bf16.msra.mxu0 0
        %871 = vmatpush.bf16.msra.mxu0 0
        %872 = vmatpush.bf16.msra.mxu0 0
        %873 = vmatpush.bf16.msra.mxu0 %v797
        %874 = vmatpush.bf16.msra.mxu0 %v796
        %875 = vmatmul.bf16.gmra.mxu0 %v839
        %v876 = vpop.f32.mrf.mxu0
        %v877 = vadd.f32 %v728, %v876
        %v878 = vpop.f32.mrf.mxu0
        %879 = vdwg.mxu0
        %880 = vmatpush.bf16.msra.mxu0 0
        %881 = vmatpush.bf16.msra.mxu0 0
        %882 = vmatpush.bf16.msra.mxu0 0
        %883 = vmatpush.bf16.msra.mxu0 0
        %884 = vmatpush.bf16.msra.mxu0 0
        %885 = vmatpush.bf16.msra.mxu0 0
        %886 = vmatpush.bf16.msra.mxu0 %v822
        %887 = vmatpush.bf16.msra.mxu0 %v821
        %888 = vmatmul.bf16.gmra.mxu0 %v839
        %v889 = vpop.f32.mrf.mxu0
        %v890 = vadd.f32 %v729, %v889
        %v891 = vpop.f32.mrf.mxu0
        %892 = vdwg.mxu0
        %v893 = vpack.c.bf16 %v760, %v760
        %v894 = vpack.c.bf16 %v785, %v785
        %v895 = vpack.c.bf16 %v810, %v810
        %v896 = vpack.c.bf16 %v835, %v835
        %v897 = vpack.c.bf16 %v851, %v851
        %v898 = vpack.c.bf16 %v864, %v864
        %v899 = vpack.c.bf16 %v877, %v877
        %v900 = vpack.c.bf16 %v890, %v890
        %v902 = vunpack.c.l.b16 %v893
        %v903 = vpack.c.b16 %v902, %v902
        %904 = vrot.lane.b32.xlu0 %v903, 120
        %v905 = vpop.permute.xlu0 %904
        %vm906 = vcmask 64512
        %v908 = vsel %vm906, %v893, 0
        %v911 = vsel %vm906, %v905, 0
        %913 = vmatpush.bf16.xpose.msra.mxu0 0
        %914 = vmatpush.bf16.xpose.msra.mxu0 0
        %915 = vmatpush.bf16.xpose.msra.mxu0 0
        %916 = vmatpush.bf16.xpose.msra.mxu0 0
        %917 = vmatpush.bf16.xpose.msra.mxu0 0
        %918 = vmatpush.bf16.xpose.msra.mxu0 0
        %919 = vmatpush.bf16.xpose.msra.mxu0 0
        %920 = vmatpush.bf16.xpose.msra.mxu0 %v911
        %921 = vmatmul.bf16.gmra.mxu0 %v908
        %v922 = vpop.f32.mrf.mxu0
        %v923 = vadd.f32 0.0, %v922
        %v924 = vpop.f32.mrf.mxu0
        %925 = vdwg.mxu0
        %v927 = vunpack.c.l.b16 %v894
        %v928 = vpack.c.b16 %v927, %v927
        %929 = vrot.lane.b32.xlu0 %v928, 120
        %v930 = vpop.permute.xlu0 %929
        %v932 = vsel %vm906, %v894, 0
        %v935 = vsel %vm906, %v930, 0
        %937 = vmatpush.bf16.xpose.msra.mxu0 0
        %938 = vmatpush.bf16.xpose.msra.mxu0 0
        %939 = vmatpush.bf16.xpose.msra.mxu0 0
        %940 = vmatpush.bf16.xpose.msra.mxu0 0
        %941 = vmatpush.bf16.xpose.msra.mxu0 0
        %942 = vmatpush.bf16.xpose.msra.mxu0 0
        %943 = vmatpush.bf16.xpose.msra.mxu0 0
        %944 = vmatpush.bf16.xpose.msra.mxu0 %v935
        %945 = vmatmul.bf16.gmra.mxu0 %v932
        %v946 = vpop.f32.mrf.mxu0
        %v947 = vadd.f32 0.0, %v946
        %v948 = vpop.f32.mrf.mxu0
        %949 = vdwg.mxu0
        %v951 = vunpack.c.l.b16 %v895
        %v952 = vpack.c.b16 %v951, %v951
        %953 = vrot.lane.b32.xlu0 %v952, 120
        %v954 = vpop.permute.xlu0 %953
        %v956 = vsel %vm906, %v895, 0
        %v959 = vsel %vm906, %v954, 0
        %961 = vmatpush.bf16.xpose.msra.mxu0 0
        %962 = vmatpush.bf16.xpose.msra.mxu0 0
        %963 = vmatpush.bf16.xpose.msra.mxu0 0
        %964 = vmatpush.bf16.xpose.msra.mxu0 0
        %965 = vmatpush.bf16.xpose.msra.mxu0 0
        %966 = vmatpush.bf16.xpose.msra.mxu0 0
        %967 = vmatpush.bf16.xpose.msra.mxu0 0
        %968 = vmatpush.bf16.xpose.msra.mxu0 %v959
        %969 = vmatmul.bf16.gmra.mxu0 %v956
        %v970 = vpop.f32.mrf.mxu0
        %v971 = vadd.f32 0.0, %v970
        %v972 = vpop.f32.mrf.mxu0
        %973 = vdwg.mxu0
        %v975 = vunpack.c.l.b16 %v896
        %v976 = vpack.c.b16 %v975, %v975
        %977 = vrot.lane.b32.xlu0 %v976, 120
        %v978 = vpop.permute.xlu0 %977
        %v980 = vsel %vm906, %v896, 0
        %v983 = vsel %vm906, %v978, 0
        %985 = vmatpush.bf16.xpose.msra.mxu0 0
        %986 = vmatpush.bf16.xpose.msra.mxu0 0
        %987 = vmatpush.bf16.xpose.msra.mxu0 0
        %988 = vmatpush.bf16.xpose.msra.mxu0 0
        %989 = vmatpush.bf16.xpose.msra.mxu0 0
        %990 = vmatpush.bf16.xpose.msra.mxu0 0
        %991 = vmatpush.bf16.xpose.msra.mxu0 0
        %992 = vmatpush.bf16.xpose.msra.mxu0 %v983
        %993 = vmatmul.bf16.gmra.mxu0 %v980
        %v994 = vpop.f32.mrf.mxu0
        %v995 = vadd.f32 0.0, %v994
        %v996 = vpop.f32.mrf.mxu0
        %997 = vdwg.mxu0
        %v999 = vunpack.c.l.b16 %v897
        %v1000 = vpack.c.b16 %v999, %v999
        %1001 = vrot.lane.b32.xlu0 %v1000, 120
        %v1002 = vpop.permute.xlu0 %1001
        %v1004 = vsel %vm906, %v897, 0
        %v1007 = vsel %vm906, %v1002, 0
        %1009 = vmatpush.bf16.xpose.msra.mxu0 0
        %1010 = vmatpush.bf16.xpose.msra.mxu0 0
        %1011 = vmatpush.bf16.xpose.msra.mxu0 0
        %1012 = vmatpush.bf16.xpose.msra.mxu0 0
        %1013 = vmatpush.bf16.xpose.msra.mxu0 0
        %1014 = vmatpush.bf16.xpose.msra.mxu0 0
        %1015 = vmatpush.bf16.xpose.msra.mxu0 0
        %1016 = vmatpush.bf16.xpose.msra.mxu0 %v1007
        %1017 = vmatmul.bf16.gmra.mxu0 %v1004
        %v1018 = vpop.f32.mrf.mxu0
        %v1019 = vadd.f32 0.0, %v1018
        %v1020 = vpop.f32.mrf.mxu0
        %1021 = vdwg.mxu0
        %v1023 = vunpack.c.l.b16 %v898
        %v1024 = vpack.c.b16 %v1023, %v1023
        %1025 = vrot.lane.b32.xlu0 %v1024, 120
        %v1026 = vpop.permute.xlu0 %1025
        %v1028 = vsel %vm906, %v898, 0
        %v1031 = vsel %vm906, %v1026, 0
        %1033 = vmatpush.bf16.xpose.msra.mxu0 0
        %1034 = vmatpush.bf16.xpose.msra.mxu0 0
        %1035 = vmatpush.bf16.xpose.msra.mxu0 0
        %1036 = vmatpush.bf16.xpose.msra.mxu0 0
        %1037 = vmatpush.bf16.xpose.msra.mxu0 0
        %1038 = vmatpush.bf16.xpose.msra.mxu0 0
        %1039 = vmatpush.bf16.xpose.msra.mxu0 0
        %1040 = vmatpush.bf16.xpose.msra.mxu0 %v1031
        %1041 = vmatmul.bf16.gmra.mxu0 %v1028
        %v1042 = vpop.f32.mrf.mxu0
        %v1043 = vadd.f32 0.0, %v1042
        %v1044 = vpop.f32.mrf.mxu0
        %1045 = vdwg.mxu0
        %v1047 = vunpack.c.l.b16 %v899
        %v1048 = vpack.c.b16 %v1047, %v1047
        %1049 = vrot.lane.b32.xlu0 %v1048, 120
        %v1050 = vpop.permute.xlu0 %1049
        %v1052 = vsel %vm906, %v899, 0
        %v1055 = vsel %vm906, %v1050, 0
        %1057 = vmatpush.bf16.xpose.msra.mxu0 0
        %1058 = vmatpush.bf16.xpose.msra.mxu0 0
        %1059 = vmatpush.bf16.xpose.msra.mxu0 0
        %1060 = vmatpush.bf16.xpose.msra.mxu0 0
        %1061 = vmatpush.bf16.xpose.msra.mxu0 0
        %1062 = vmatpush.bf16.xpose.msra.mxu0 0
        %1063 = vmatpush.bf16.xpose.msra.mxu0 0
        %1064 = vmatpush.bf16.xpose.msra.mxu0 %v1055
        %1065 = vmatmul.bf16.gmra.mxu0 %v1052
        %v1066 = vpop.f32.mrf.mxu0
        %v1067 = vadd.f32 0.0, %v1066
        %v1068 = vpop.f32.mrf.mxu0
        %1069 = vdwg.mxu0
        %v1071 = vunpack.c.l.b16 %v900
        %v1072 = vpack.c.b16 %v1071, %v1071
        %1073 = vrot.lane.b32.xlu0 %v1072, 120
        %v1074 = vpop.permute.xlu0 %1073
        %v1076 = vsel %vm906, %v900, 0
        %v1079 = vsel %vm906, %v1074, 0
        %1081 = vmatpush.bf16.xpose.msra.mxu0 0
        %1082 = vmatpush.bf16.xpose.msra.mxu0 0
        %1083 = vmatpush.bf16.xpose.msra.mxu0 0
        %1084 = vmatpush.bf16.xpose.msra.mxu0 0
        %1085 = vmatpush.bf16.xpose.msra.mxu0 0
        %1086 = vmatpush.bf16.xpose.msra.mxu0 0
        %1087 = vmatpush.bf16.xpose.msra.mxu0 0
        %1088 = vmatpush.bf16.xpose.msra.mxu0 %v1079
        %1089 = vmatmul.bf16.gmra.mxu0 %v1076
        %v1090 = vpop.f32.mrf.mxu0
        %v1091 = vadd.f32 0.0, %v1090
        %v1092 = vpop.f32.mrf.mxu0
        %1093 = vdwg.mxu0
        %v1094 = vmul.f32 %v923, 0.35355338
        %v1095 = vmul.f32 %v947, 0.35355338
        %v1096 = vmul.f32 %v971, 0.35355338
        %v1097 = vmul.f32 %v995, 0.35355338
        %v1098 = vmul.f32 %v1019, 0.35355338
        %v1099 = vmul.f32 %v1043, 0.35355338
        %v1100 = vmul.f32 %v1067, 0.35355338
        %v1101 = vmul.f32 %v1091, 0.35355338
        %v1102 = vld [vmem:[%s640] sm:$0x1]
        %v1103 = vld [vmem:[%s640 + $0x1] sm:$0x1]
        %v1106 = vperm.slane %v1102, 0
        %v1107 = vperm.slane %v1103, 0
        %v1110 = vadd.f32 %v1094, %v1106
        %v1111 = vadd.f32 %v1095, %v1106
        %v1112 = vadd.f32 %v1096, %v1106
        %v1113 = vadd.f32 %v1097, %v1106
        %v1114 = vadd.f32 %v1098, %v1107
        %v1115 = vadd.f32 %v1099, %v1107
        %v1116 = vadd.f32 %v1100, %v1107
        %v1117 = vadd.f32 %v1101, %v1107
        %v1118 = vsel %vm906, %v1110, -inf
        %1119 = vmax.xlane.f32.xlu0 %v1118
        %v1120 = vpop.xlane.xlu0 %1119
        %v1121 = vsel %vm906, %v1111, -inf
        %1122 = vmax.xlane.f32.xlu0 %v1121
        %v1123 = vpop.xlane.xlu0 %1122
        %v1124 = vsel %vm906, %v1112, -inf
        %1125 = vmax.xlane.f32.xlu0 %v1124
        %v1126 = vpop.xlane.xlu0 %1125
        %v1127 = vsel %vm906, %v1113, -inf
        %1128 = vmax.xlane.f32.xlu0 %v1127
        %v1129 = vpop.xlane.xlu0 %1128
        %v1130 = vsel %vm906, %v1114, -inf
        %1131 = vmax.xlane.f32.xlu0 %v1130
        %v1132 = vpop.xlane.xlu0 %1131
        %v1133 = vsel %vm906, %v1115, -inf
        %1134 = vmax.xlane.f32.xlu0 %v1133
        %v1135 = vpop.xlane.xlu0 %1134
        %v1136 = vsel %vm906, %v1116, -inf
        %1137 = vmax.xlane.f32.xlu0 %v1136
        %v1138 = vpop.xlane.xlu0 %1137
        %v1139 = vsel %vm906, %v1117, -inf
        %1140 = vmax.xlane.f32.xlu0 %v1139
        %v1141 = vpop.xlane.xlu0 %1140
        %v1142 = vsub.f32 %v1110, %v1120
        %v1143 = vsub.f32 %v1111, %v1123
        %v1144 = vsub.f32 %v1112, %v1126
        %v1145 = vsub.f32 %v1113, %v1129
        %v1146 = vsub.f32 %v1114, %v1132
        %v1147 = vsub.f32 %v1115, %v1135
        %v1148 = vsub.f32 %v1116, %v1138
        %v1149 = vsub.f32 %v1117, %v1141
        %v1150 = vmul.f32 %v1142, 1.442695
        %v1151 = vpow.pop %v1150
        %v1152 = vmul.f32 %v1143, 1.442695
        %v1153 = vpow.pop %v1152
        %v1154 = vmul.f32 %v1144, 1.442695
        %v1155 = vpow.pop %v1154
        %v1156 = vmul.f32 %v1145, 1.442695
        %v1157 = vpow.pop %v1156
        %v1158 = vmul.f32 %v1146, 1.442695
        %v1159 = vpow.pop %v1158
        %v1160 = vmul.f32 %v1147, 1.442695
        %v1161 = vpow.pop %v1160
        %v1162 = vmul.f32 %v1148, 1.442695
        %v1163 = vpow.pop %v1162
        %v1164 = vmul.f32 %v1149, 1.442695
        %v1165 = vpow.pop %v1164
        %v1166 = vsel %vm906, %v1151, 0.0
        %1167 = vadd.xlane.f32.xlu0 %v1166
        %v1168 = vpop.xlane.xlu0 %1167
        %v1169 = vsel %vm906, %v1153, 0.0
        %1170 = vadd.xlane.f32.xlu0 %v1169
        %v1171 = vpop.xlane.xlu0 %1170
        %v1172 = vsel %vm906, %v1155, 0.0
        %1173 = vadd.xlane.f32.xlu0 %v1172
        %v1174 = vpop.xlane.xlu0 %1173
        %v1175 = vsel %vm906, %v1157, 0.0
        %1176 = vadd.xlane.f32.xlu0 %v1175
        %v1177 = vpop.xlane.xlu0 %1176
        %v1178 = vsel %vm906, %v1159, 0.0
        %1179 = vadd.xlane.f32.xlu0 %v1178
        %v1180 = vpop.xlane.xlu0 %1179
        %v1181 = vsel %vm906, %v1161, 0.0
        %1182 = vadd.xlane.f32.xlu0 %v1181
        %v1183 = vpop.xlane.xlu0 %1182
        %v1184 = vsel %vm906, %v1163, 0.0
        %1185 = vadd.xlane.f32.xlu0 %v1184
        %v1186 = vpop.xlane.xlu0 %1185
        %v1187 = vsel %vm906, %v1165, 0.0
        %1188 = vadd.xlane.f32.xlu0 %v1187
        %v1189 = vpop.xlane.xlu0 %1188
        %v1190 = vrcp.pop %v1168
        %v1191 = vrcp.pop %v1171
        %v1192 = vrcp.pop %v1174
        %v1193 = vrcp.pop %v1177
        %v1194 = vrcp.pop %v1180
        %v1195 = vrcp.pop %v1183
        %v1196 = vrcp.pop %v1186
        %v1197 = vrcp.pop %v1189
        %v1198 = vmul.f32 %v1151, %v1190
        %v1199 = vmul.f32 %v1153, %v1191
        %v1200 = vmul.f32 %v1155, %v1192
        %v1201 = vmul.f32 %v1157, %v1193
        %v1202 = vmul.f32 %v1159, %v1194
        %v1203 = vmul.f32 %v1161, %v1195
        %v1204 = vmul.f32 %v1163, %v1196
        %v1205 = vmul.f32 %v1165, %v1197
        %v1206 = vpack.c.bf16 %v1198, %v1198
        %v1207 = vpack.c.bf16 %v1199, %v1199
        %v1208 = vpack.c.bf16 %v1200, %v1200
        %v1209 = vpack.c.bf16 %v1201, %v1201
        %v1210 = vpack.c.bf16 %v1202, %v1202
        %v1211 = vpack.c.bf16 %v1203, %v1203
        %v1212 = vpack.c.bf16 %v1204, %v1204
        %v1213 = vpack.c.bf16 %v1205, %v1205
        %1214 = vrot.lane.b32.xlu0 %v903, 112
        %v1215 = vpop.permute.xlu0 %1214
        %v1217 = vsel %vm906, %v1206, 0
        %vm1219 = vcmask 1043456
        %v1221 = vsel %vm1219, %v1215, 0
        %1223 = vmatpush.bf16.msra.mxu0 0
        %1224 = vmatpush.bf16.msra.mxu0 0
        %1225 = vmatpush.bf16.msra.mxu0 0
        %1226 = vmatpush.bf16.msra.mxu0 0
        %1227 = vmatpush.bf16.msra.mxu0 0
        %1228 = vmatpush.bf16.msra.mxu0 0
        %1229 = vmatpush.bf16.msra.mxu0 0
        %1230 = vmatpush.bf16.msra.mxu0 %v1221
        %1231 = vmatmul.bf16.gmra.mxu0 %v1217
        %v1232 = vpop.f32.mrf.mxu0
        %v1233 = vadd.f32 0.0, %v1232
        %v1234 = vpop.f32.mrf.mxu0
        %1235 = vdwg.mxu0
        %1236 = vrot.lane.b32.xlu0 %v928, 112
        %v1237 = vpop.permute.xlu0 %1236
        %v1239 = vsel %vm906, %v1207, 0
        %v1242 = vsel %vm1219, %v1237, 0
        %1244 = vmatpush.bf16.msra.mxu0 0
        %1245 = vmatpush.bf16.msra.mxu0 0
        %1246 = vmatpush.bf16.msra.mxu0 0
        %1247 = vmatpush.bf16.msra.mxu0 0
        %1248 = vmatpush.bf16.msra.mxu0 0
        %1249 = vmatpush.bf16.msra.mxu0 0
        %1250 = vmatpush.bf16.msra.mxu0 0
        %1251 = vmatpush.bf16.msra.mxu0 %v1242
        %1252 = vmatmul.bf16.gmra.mxu0 %v1239
        %v1253 = vpop.f32.mrf.mxu0
        %v1254 = vadd.f32 0.0, %v1253
        %v1255 = vpop.f32.mrf.mxu0
        %1256 = vdwg.mxu0
        %1257 = vrot.lane.b32.xlu0 %v952, 112
        %v1258 = vpop.permute.xlu0 %1257
        %v1260 = vsel %vm906, %v1208, 0
        %v1263 = vsel %vm1219, %v1258, 0
        %1265 = vmatpush.bf16.msra.mxu0 0
        %1266 = vmatpush.bf16.msra.mxu0 0
        %1267 = vmatpush.bf16.msra.mxu0 0
        %1268 = vmatpush.bf16.msra.mxu0 0
        %1269 = vmatpush.bf16.msra.mxu0 0
        %1270 = vmatpush.bf16.msra.mxu0 0
        %1271 = vmatpush.bf16.msra.mxu0 0
        %1272 = vmatpush.bf16.msra.mxu0 %v1263
        %1273 = vmatmul.bf16.gmra.mxu0 %v1260
        %v1274 = vpop.f32.mrf.mxu0
        %v1275 = vadd.f32 0.0, %v1274
        %v1276 = vpop.f32.mrf.mxu0
        %1277 = vdwg.mxu0
        %1278 = vrot.lane.b32.xlu0 %v976, 112
        %v1279 = vpop.permute.xlu0 %1278
        %v1281 = vsel %vm906, %v1209, 0
        %v1284 = vsel %vm1219, %v1279, 0
        %1286 = vmatpush.bf16.msra.mxu0 0
        %1287 = vmatpush.bf16.msra.mxu0 0
        %1288 = vmatpush.bf16.msra.mxu0 0
        %1289 = vmatpush.bf16.msra.mxu0 0
        %1290 = vmatpush.bf16.msra.mxu0 0
        %1291 = vmatpush.bf16.msra.mxu0 0
        %1292 = vmatpush.bf16.msra.mxu0 0
        %1293 = vmatpush.bf16.msra.mxu0 %v1284
        %1294 = vmatmul.bf16.gmra.mxu0 %v1281
        %v1295 = vpop.f32.mrf.mxu0
        %v1296 = vadd.f32 0.0, %v1295
        %v1297 = vpop.f32.mrf.mxu0
        %1298 = vdwg.mxu0
        %1299 = vrot.lane.b32.xlu0 %v1000, 112
        %v1300 = vpop.permute.xlu0 %1299
        %v1302 = vsel %vm906, %v1210, 0
        %v1305 = vsel %vm1219, %v1300, 0
        %1307 = vmatpush.bf16.msra.mxu0 0
        %1308 = vmatpush.bf16.msra.mxu0 0
        %1309 = vmatpush.bf16.msra.mxu0 0
        %1310 = vmatpush.bf16.msra.mxu0 0
        %1311 = vmatpush.bf16.msra.mxu0 0
        %1312 = vmatpush.bf16.msra.mxu0 0
        %1313 = vmatpush.bf16.msra.mxu0 0
        %1314 = vmatpush.bf16.msra.mxu0 %v1305
        %1315 = vmatmul.bf16.gmra.mxu0 %v1302
        %v1316 = vpop.f32.mrf.mxu0
        %v1317 = vadd.f32 0.0, %v1316
        %v1318 = vpop.f32.mrf.mxu0
        %1319 = vdwg.mxu0
        %1320 = vrot.lane.b32.xlu0 %v1024, 112
        %v1321 = vpop.permute.xlu0 %1320
        %v1323 = vsel %vm906, %v1211, 0
        %v1326 = vsel %vm1219, %v1321, 0
        %1328 = vmatpush.bf16.msra.mxu0 0
        %1329 = vmatpush.bf16.msra.mxu0 0
        %1330 = vmatpush.bf16.msra.mxu0 0
        %1331 = vmatpush.bf16.msra.mxu0 0
        %1332 = vmatpush.bf16.msra.mxu0 0
        %1333 = vmatpush.bf16.msra.mxu0 0
        %1334 = vmatpush.bf16.msra.mxu0 0
        %1335 = vmatpush.bf16.msra.mxu0 %v1326
        %1336 = vmatmul.bf16.gmra.mxu0 %v1323
        %v1337 = vpop.f32.mrf.mxu0
        %v1338 = vadd.f32 0.0, %v1337
        %v1339 = vpop.f32.mrf.mxu0
        %1340 = vdwg.mxu0
        %1341 = vrot.lane.b32.xlu0 %v1048, 112
        %v1342 = vpop.permute.xlu0 %1341
        %v1344 = vsel %vm906, %v1212, 0
        %v1347 = vsel %vm1219, %v1342, 0
        %1349 = vmatpush.bf16.msra.mxu0 0
        %1350 = vmatpush.bf16.msra.mxu0 0
        %1351 = vmatpush.bf16.msra.mxu0 0
        %1352 = vmatpush.bf16.msra.mxu0 0
        %1353 = vmatpush.bf16.msra.mxu0 0
        %1354 = vmatpush.bf16.msra.mxu0 0
        %1355 = vmatpush.bf16.msra.mxu0 0
        %1356 = vmatpush.bf16.msra.mxu0 %v1347
        %1357 = vmatmul.bf16.gmra.mxu0 %v1344
        %v1358 = vpop.f32.mrf.mxu0
        %v1359 = vadd.f32 0.0, %v1358
        %v1360 = vpop.f32.mrf.mxu0
        %1361 = vdwg.mxu0
        %1362 = vrot.lane.b32.xlu0 %v1072, 112
        %v1363 = vpop.permute.xlu0 %1362
        %v1365 = vsel %vm906, %v1213, 0
        %v1368 = vsel %vm1219, %v1363, 0
        %1370 = vmatpush.bf16.msra.mxu0 0
        %1371 = vmatpush.bf16.msra.mxu0 0
        %1372 = vmatpush.bf16.msra.mxu0 0
        %1373 = vmatpush.bf16.msra.mxu0 0
        %1374 = vmatpush.bf16.msra.mxu0 0
        %1375 = vmatpush.bf16.msra.mxu0 0
        %1376 = vmatpush.bf16.msra.mxu0 0
        %1377 = vmatpush.bf16.msra.mxu0 %v1368
        %1378 = vmatmul.bf16.gmra.mxu0 %v1365
        %v1379 = vpop.f32.mrf.mxu0
        %v1380 = vadd.f32 0.0, %v1379
        %v1381 = vpop.f32.mrf.mxu0
        %1382 = vdwg.mxu0
        %v1383 = vld [vmem:[%s655] sm:$0xf]
        %v1384 = vld [vmem:[%s655 + $0x4] sm:$0xf]
        %v1385 = vld [vmem:[%s655 + $0x8] sm:$0xf]
        %v1386 = vld [vmem:[%s655 + $0xc] sm:$0xf]
        %v1387 = vpack.c.bf16 %v1233, %v1233
        %v1388 = vpack.c.bf16 %v1254, %v1254
        %v1389 = vpack.c.bf16 %v1275, %v1275
        %v1390 = vpack.c.bf16 %v1296, %v1296
        %v1391 = vpack.c.bf16 %v1317, %v1317
        %v1392 = vpack.c.bf16 %v1338, %v1338
        %v1393 = vpack.c.bf16 %v1359, %v1359
        %v1394 = vpack.c.bf16 %v1380, %v1380
        %v1396 = vsel %vm906, %v1387, 0
        %v1399 = vsel %vm1219, %v1383, 0
        %1401 = vmatpush.bf16.msra.mxu0 0
        %1402 = vmatpush.bf16.msra.mxu0 0
        %1403 = vmatpush.bf16.msra.mxu0 0
        %1404 = vmatpush.bf16.msra.mxu0 0
        %1405 = vmatpush.bf16.msra.mxu0 0
        %1406 = vmatpush.bf16.msra.mxu0 0
        %1407 = vmatpush.bf16.msra.mxu0 0
        %1408 = vmatpush.bf16.msra.mxu0 %v1399
        %1409 = vmatmul.bf16.gmra.mxu0 %v1396
        %v1410 = vpop.f32.mrf.mxu0
        %v1411 = vadd.f32 0.0, %v1410
        %v1412 = vpop.f32.mrf.mxu0
        %1413 = vdwg.mxu0
        %v1415 = vsel %vm906, %v1388, 0
        %v1418 = vsel %vm1219, %v1384, 0
        %1420 = vmatpush.bf16.msra.mxu0 0
        %1421 = vmatpush.bf16.msra.mxu0 0
        %1422 = vmatpush.bf16.msra.mxu0 0
        %1423 = vmatpush.bf16.msra.mxu0 0
        %1424 = vmatpush.bf16.msra.mxu0 0
        %1425 = vmatpush.bf16.msra.mxu0 0
        %1426 = vmatpush.bf16.msra.mxu0 0
        %1427 = vmatpush.bf16.msra.mxu0 %v1418
        %1428 = vmatmul.bf16.gmra.mxu0 %v1415
        %v1429 = vpop.f32.mrf.mxu0
        %v1430 = vadd.f32 0.0, %v1429
        %v1431 = vpop.f32.mrf.mxu0
        %1432 = vdwg.mxu0
        %v1434 = vsel %vm906, %v1389, 0
        %v1437 = vsel %vm1219, %v1385, 0
        %1439 = vmatpush.bf16.msra.mxu0 0
        %1440 = vmatpush.bf16.msra.mxu0 0
        %1441 = vmatpush.bf16.msra.mxu0 0
        %1442 = vmatpush.bf16.msra.mxu0 0
        %1443 = vmatpush.bf16.msra.mxu0 0
        %1444 = vmatpush.bf16.msra.mxu0 0
        %1445 = vmatpush.bf16.msra.mxu0 0
        %1446 = vmatpush.bf16.msra.mxu0 %v1437
        %1447 = vmatmul.bf16.gmra.mxu0 %v1434
        %v1448 = vpop.f32.mrf.mxu0
        %v1449 = vadd.f32 0.0, %v1448
        %v1450 = vpop.f32.mrf.mxu0
        %1451 = vdwg.mxu0
        %v1453 = vsel %vm906, %v1390, 0
        %v1456 = vsel %vm1219, %v1386, 0
        %1458 = vmatpush.bf16.msra.mxu0 0
        %1459 = vmatpush.bf16.msra.mxu0 0
        %1460 = vmatpush.bf16.msra.mxu0 0
        %1461 = vmatpush.bf16.msra.mxu0 0
        %1462 = vmatpush.bf16.msra.mxu0 0
        %1463 = vmatpush.bf16.msra.mxu0 0
        %1464 = vmatpush.bf16.msra.mxu0 0
        %1465 = vmatpush.bf16.msra.mxu0 %v1456
        %1466 = vmatmul.bf16.gmra.mxu0 %v1453
        %v1467 = vpop.f32.mrf.mxu0
        %v1468 = vadd.f32 0.0, %v1467
        %v1469 = vpop.f32.mrf.mxu0
        %1470 = vdwg.mxu0
        %v1472 = vsel %vm906, %v1391, 0
        %1474 = vmatpush.bf16.msra.mxu0 0
        %1475 = vmatpush.bf16.msra.mxu0 0
        %1476 = vmatpush.bf16.msra.mxu0 0
        %1477 = vmatpush.bf16.msra.mxu0 0
        %1478 = vmatpush.bf16.msra.mxu0 0
        %1479 = vmatpush.bf16.msra.mxu0 0
        %1480 = vmatpush.bf16.msra.mxu0 0
        %1481 = vmatpush.bf16.msra.mxu0 %v1399
        %1482 = vmatmul.bf16.gmra.mxu0 %v1472
        %v1483 = vpop.f32.mrf.mxu0
        %v1484 = vadd.f32 0.0, %v1483
        %v1485 = vpop.f32.mrf.mxu0
        %1486 = vdwg.mxu0
        %v1488 = vsel %vm906, %v1392, 0
        %1490 = vmatpush.bf16.msra.mxu0 0
        %1491 = vmatpush.bf16.msra.mxu0 0
        %1492 = vmatpush.bf16.msra.mxu0 0
        %1493 = vmatpush.bf16.msra.mxu0 0
        %1494 = vmatpush.bf16.msra.mxu0 0
        %1495 = vmatpush.bf16.msra.mxu0 0
        %1496 = vmatpush.bf16.msra.mxu0 0
        %1497 = vmatpush.bf16.msra.mxu0 %v1418
        %1498 = vmatmul.bf16.gmra.mxu0 %v1488
        %v1499 = vpop.f32.mrf.mxu0
        %v1500 = vadd.f32 0.0, %v1499
        %v1501 = vpop.f32.mrf.mxu0
        %1502 = vdwg.mxu0
        %v1504 = vsel %vm906, %v1393, 0
        %1506 = vmatpush.bf16.msra.mxu0 0
        %1507 = vmatpush.bf16.msra.mxu0 0
        %1508 = vmatpush.bf16.msra.mxu0 0
        %1509 = vmatpush.bf16.msra.mxu0 0
        %1510 = vmatpush.bf16.msra.mxu0 0
        %1511 = vmatpush.bf16.msra.mxu0 0
        %1512 = vmatpush.bf16.msra.mxu0 0
        %1513 = vmatpush.bf16.msra.mxu0 %v1437
        %1514 = vmatmul.bf16.gmra.mxu0 %v1504
        %v1515 = vpop.f32.mrf.mxu0
        %v1516 = vadd.f32 0.0, %v1515
        %v1517 = vpop.f32.mrf.mxu0
        %1518 = vdwg.mxu0
        %v1520 = vsel %vm906, %v1394, 0
        %1522 = vmatpush.bf16.msra.mxu0 0
        %1523 = vmatpush.bf16.msra.mxu0 0
        %1524 = vmatpush.bf16.msra.mxu0 0
        %1525 = vmatpush.bf16.msra.mxu0 0
        %1526 = vmatpush.bf16.msra.mxu0 0
        %1527 = vmatpush.bf16.msra.mxu0 0
        %1528 = vmatpush.bf16.msra.mxu0 0
        %1529 = vmatpush.bf16.msra.mxu0 %v1456
        %1530 = vmatmul.bf16.gmra.mxu0 %v1520
        %v1531 = vpop.f32.mrf.mxu0
        %v1532 = vadd.f32 0.0, %v1531
        %v1533 = vpop.f32.mrf.mxu0
        %1534 = vdwg.mxu0
        %v1535 = vsel %vm746, %v1411, 0.0
        %v1536 = vsel %vm746, %v1430, 0.0
        %v1537 = vadd.f32 %v1535, %v1536
        %v1538 = vsel %vm746, %v1449, 0.0
        %v1539 = vadd.f32 %v1537, %v1538
        %v1540 = vsel %vm746, %v1468, 0.0
        %v1541 = vadd.f32 %v1539, %v1540
        %v1542 = vsel %vm746, %v1484, 0.0
        %v1543 = vsel %vm746, %v1500, 0.0
        %v1544 = vadd.f32 %v1542, %v1543
        %v1545 = vsel %vm746, %v1516, 0.0
        %v1546 = vadd.f32 %v1544, %v1545
        %v1547 = vsel %vm746, %v1532, 0.0
        %v1548 = vadd.f32 %v1546, %v1547
        %v1549 = vld [vmem:[%s658] sm:$0x1]
        %v1551 = vperm.slane %v1549, 0
        %v1553 = vadd.f32 %v1541, %v1551
        %v1554 = vadd.f32 %v1548, %v1551
        %v1555 = vadd.f32 %v698, %v1553
        %v1556 = vadd.f32 %v699, %v1554
        %v1557 = vld [vmem:[%s661] sm:$0x1]
        %v1558 = vld [vmem:[%s664] sm:$0x1]
        %v1559 = vsel %vm746, %v1555, 0.0
        %1560 = vadd.xlane.f32.xlu0 %v1559
        %v1561 = vpop.xlane.xlu0 %1560
        %v1562 = vsel %vm746, %v1556, 0.0
        %1563 = vadd.xlane.f32.xlu0 %v1562
        %v1564 = vpop.xlane.xlu0 %1563
        %v1565 = vrcp.pop 32.0
        %v1566 = vmul.f32 32.0, %v1565
        %v1567 = vsub.f32 1.0, %v1566
        %v1568 = vmul.f32 %v1565, %v1567
        %v1569 = vadd.f32 %v1565, %v1568
        %vm1570 = vweird.f32 %v1565
        %v1571 = vsel %vm1570, %v1565, %v1569
        %v1572 = vmul.f32 %v1561, %v1571
        %v1573 = vmul.f32 %v1564, %v1571
        %v1574 = vsub.f32 %v1555, %v1572
        %v1575 = vsub.f32 %v1556, %v1573
        %v1576 = vmul.f32 %v1574, %v1574
        %v1577 = vmul.f32 %v1575, %v1575
        %v1578 = vsel %vm746, %v1576, 0.0
        %1579 = vadd.xlane.f32.xlu0 %v1578
        %v1580 = vpop.xlane.xlu0 %1579
        %v1581 = vsel %vm746, %v1577, 0.0
        %1582 = vadd.xlane.f32.xlu0 %v1581
        %v1583 = vpop.xlane.xlu0 %1582
        %v1584 = vmul.f32 %v1580, %v1571
        %v1585 = vmul.f32 %v1583, %v1571
        %v1586 = vadd.f32 %v1584, 1e-06
        %v1587 = vadd.f32 %v1585, 1e-06
        %v1588 = vrsqrt.pop %v1586
        %v1589 = vmul.f32 %v1588, %v1586
        %v1590 = vmul.f32 %v1589, %v1588
        %v1591 = vmul.f32 0.5, %v1590
        %v1592 = vsub.f32 1.5, %v1591
        %v1593 = vmul.f32 %v1588, %v1592
        %vm1594 = vweird.f32 %v1586
        %vm1595 = vweird.f32 %v1588
        %vm1596 = vmor %vm1594, %vm1595
        %v1597 = vsel %vm1596, %v1588, %v1593
        %v1598 = vrsqrt.pop %v1587
        %v1599 = vmul.f32 %v1598, %v1587
        %v1600 = vmul.f32 %v1599, %v1598
        %v1601 = vmul.f32 0.5, %v1600
        %v1602 = vsub.f32 1.5, %v1601
        %v1603 = vmul.f32 %v1598, %v1602
        %vm1604 = vweird.f32 %v1587
        %vm1605 = vweird.f32 %v1598
        %vm1606 = vmor %vm1604, %vm1605
        %v1607 = vsel %vm1606, %v1598, %v1603
        %v1608 = vmul.f32 %v1574, %v1597
        %v1609 = vmul.f32 %v1575, %v1607
        %v1611 = vperm.slane %v1557, 0
        %v1613 = vmul.f32 %v1608, %v1611
        %v1614 = vmul.f32 %v1609, %v1611
        %v1616 = vperm.slane %v1558, 0
        %v1618 = vadd.f32 %v1613, %v1616
        %v1619 = vadd.f32 %v1614, %v1616
        %v1620 = vld [vmem:[%s669] sm:$0xf]
        %v1621 = vld [vmem:[%s669 + $0x4] sm:$0xf]
        %v1622 = vld [vmem:[%s669 + $0x8] sm:$0xf]
        %v1623 = vld [vmem:[%s669 + $0xc] sm:$0xf]
        %v1624 = vld [vmem:[%s677] sm:$0xf]
        %v1625 = vld [vmem:[%s677 + $0x4] sm:$0xf]
        %v1626 = vld [vmem:[%s677 + $0x8] sm:$0xf]
        %v1627 = vld [vmem:[%s677 + $0xc] sm:$0xf]
        %v1628 = vld [vmem:[%s677 + $0x10] sm:$0xf]
        %v1629 = vld [vmem:[%s677 + $0x14] sm:$0xf]
        %v1630 = vld [vmem:[%s677 + $0x18] sm:$0xf]
        %v1631 = vld [vmem:[%s677 + $0x1c] sm:$0xf]
        %v1632 = vpack.c.bf16 %v1618, %v1618
        %v1633 = vpack.c.bf16 %v1619, %v1619
        %v1634 = vld [vmem:[%s672] sm:$0x1]
        %v1636 = vperm.slane %v1634, 0
        %v1642 = vunpack.c.l.b16 %v1620
        %v1643 = vunpack.c.l.b16 %v1621
        %v1644 = vunpack.c.l.b16 %v1622
        %v1645 = vunpack.c.l.b16 %v1623
        %v1646 = vpack.c.b16 %v1643, %v1642
        %v1647 = vpack.c.b16 %v1645, %v1644
        %v1651 = vsel %vm746, %v1632, 0
        %1653 = vmatpush.bf16.msra.mxu0 0
        %1654 = vmatpush.bf16.msra.mxu0 0
        %1655 = vmatpush.bf16.msra.mxu0 0
        %1656 = vmatpush.bf16.msra.mxu0 0
        %1657 = vmatpush.bf16.msra.mxu0 0
        %1658 = vmatpush.bf16.msra.mxu0 0
        %1659 = vmatpush.bf16.msra.mxu0 %v1647
        %1660 = vmatpush.bf16.msra.mxu0 %v1646
        %1661 = vmatmul.bf16.gmra.mxu0 %v1651
        %v1662 = vpop.f32.mrf.mxu0
        %v1663 = vadd.f32 %v1636, %v1662
        %v1664 = vpop.f32.mrf.mxu0
        %1665 = vdwg.mxu0
        %v1667 = vsel %vm746, %v1633, 0
        %1669 = vmatpush.bf16.msra.mxu0 0
        %1670 = vmatpush.bf16.msra.mxu0 0
        %1671 = vmatpush.bf16.msra.mxu0 0
        %1672 = vmatpush.bf16.msra.mxu0 0
        %1673 = vmatpush.bf16.msra.mxu0 0
        %1674 = vmatpush.bf16.msra.mxu0 0
        %1675 = vmatpush.bf16.msra.mxu0 %v1647
        %1676 = vmatpush.bf16.msra.mxu0 %v1646
        %1677 = vmatmul.bf16.gmra.mxu0 %v1667
        %v1678 = vpop.f32.mrf.mxu0
        %v1679 = vadd.f32 %v1636, %v1678
        %v1680 = vpop.f32.mrf.mxu0
        %1681 = vdwg.mxu0
        %v1682 = vmax.f32 %v1663, 0.0
        %v1683 = vmax.f32 %v1679, 0.0
        %v1684 = vpack.c.bf16 %v1682, %v1682
        %v1685 = vpack.c.bf16 %v1683, %v1683
        %v1686 = vld [vmem:[%s680] sm:$0x1]
        %v1688 = vperm.slane %v1686, 0
        %v1698 = vunpack.c.l.b16 %v1624
        %v1699 = vunpack.c.l.b16 %v1625
        %v1700 = vunpack.c.l.b16 %v1626
        %v1701 = vunpack.c.l.b16 %v1627
        %v1702 = vunpack.c.l.b16 %v1628
        %v1703 = vunpack.c.l.b16 %v1629
        %v1704 = vunpack.c.l.b16 %v1630
        %v1705 = vunpack.c.l.b16 %v1631
        %v1706 = vpack.c.b16 %v1699, %v1698
        %v1707 = vpack.c.b16 %v1701, %v1700
        %v1708 = vpack.c.b16 %v1703, %v1702
        %v1709 = vpack.c.b16 %v1705, %v1704
        %vm1714 = vcmask 523264
        %v1716 = vsel %vm1714, %v1684, 0
        %1718 = vmatpush.bf16.msra.mxu0 0
        %1719 = vmatpush.bf16.msra.mxu0 0
        %1720 = vmatpush.bf16.msra.mxu0 0
        %1721 = vmatpush.bf16.msra.mxu0 0
        %1722 = vmatpush.bf16.msra.mxu0 %v1709
        %1723 = vmatpush.bf16.msra.mxu0 %v1708
        %1724 = vmatpush.bf16.msra.mxu0 %v1707
        %1725 = vmatpush.bf16.msra.mxu0 %v1706
        %1726 = vmatmul.bf16.gmra.mxu0 %v1716
        %v1727 = vpop.f32.mrf.mxu0
        %v1728 = vadd.f32 %v1688, %v1727
        %v1729 = vpop.f32.mrf.mxu0
        %1730 = vdwg.mxu0
        %v1732 = vsel %vm1714, %v1685, 0
        %1734 = vmatpush.bf16.msra.mxu0 0
        %1735 = vmatpush.bf16.msra.mxu0 0
        %1736 = vmatpush.bf16.msra.mxu0 0
        %1737 = vmatpush.bf16.msra.mxu0 0
        %1738 = vmatpush.bf16.msra.mxu0 %v1709
        %1739 = vmatpush.bf16.msra.mxu0 %v1708
        %1740 = vmatpush.bf16.msra.mxu0 %v1707
        %1741 = vmatpush.bf16.msra.mxu0 %v1706
        %1742 = vmatmul.bf16.gmra.mxu0 %v1732
        %v1743 = vpop.f32.mrf.mxu0
        %v1744 = vadd.f32 %v1688, %v1743
        %v1745 = vpop.f32.mrf.mxu0
        %1746 = vdwg.mxu0
        %v1747 = vadd.f32 %v1618, %v1728
        %v1748 = vadd.f32 %v1619, %v1744
        %v1749 = vld [vmem:[%s683] sm:$0x1]
        %v1750 = vld [vmem:[%s686] sm:$0x1]
        %v1751 = vsel %vm746, %v1747, 0.0
        %1752 = vadd.xlane.f32.xlu0 %v1751
        %v1753 = vpop.xlane.xlu0 %1752
        %v1754 = vsel %vm746, %v1748, 0.0
        %1755 = vadd.xlane.f32.xlu0 %v1754
        %v1756 = vpop.xlane.xlu0 %1755
        %v1757 = vmul.f32 %v1753, %v1571
        %v1758 = vmul.f32 %v1756, %v1571
        %v1759 = vsub.f32 %v1747, %v1757
        %v1760 = vsub.f32 %v1748, %v1758
        %v1761 = vmul.f32 %v1759, %v1759
        %v1762 = vmul.f32 %v1760, %v1760
        %v1763 = vsel %vm746, %v1761, 0.0
        %1764 = vadd.xlane.f32.xlu0 %v1763
        %v1765 = vpop.xlane.xlu0 %1764
        %v1766 = vsel %vm746, %v1762, 0.0
        %1767 = vadd.xlane.f32.xlu0 %v1766
        %v1768 = vpop.xlane.xlu0 %1767
        %v1769 = vmul.f32 %v1765, %v1571
        %v1770 = vmul.f32 %v1768, %v1571
        %v1771 = vadd.f32 %v1769, 1e-06
        %v1772 = vadd.f32 %v1770, 1e-06
        %v1773 = vrsqrt.pop %v1771
        %v1774 = vmul.f32 %v1773, %v1771
        %v1775 = vmul.f32 %v1774, %v1773
        %v1776 = vmul.f32 0.5, %v1775
        %v1777 = vsub.f32 1.5, %v1776
        %v1778 = vmul.f32 %v1773, %v1777
        %vm1779 = vweird.f32 %v1771
        %vm1780 = vweird.f32 %v1773
        %vm1781 = vmor %vm1779, %vm1780
        %v1782 = vsel %vm1781, %v1773, %v1778
        %v1783 = vrsqrt.pop %v1772
        %v1784 = vmul.f32 %v1783, %v1772
        %v1785 = vmul.f32 %v1784, %v1783
        %v1786 = vmul.f32 0.5, %v1785
        %v1787 = vsub.f32 1.5, %v1786
        %v1788 = vmul.f32 %v1783, %v1787
        %vm1789 = vweird.f32 %v1772
        %vm1790 = vweird.f32 %v1783
        %vm1791 = vmor %vm1789, %vm1790
        %v1792 = vsel %vm1791, %v1783, %v1788
        %v1793 = vmul.f32 %v1759, %v1782
        %v1794 = vmul.f32 %v1760, %v1792
        %v1796 = vperm.slane %v1749, 0
        %v1798 = vmul.f32 %v1793, %v1796
        %v1799 = vmul.f32 %v1794, %v1796
        %v1801 = vperm.slane %v1750, 0
        %v1803 = vadd.f32 %v1798, %v1801
        %v1804 = vadd.f32 %v1799, %v1801
        %1805 = vst.msk [vmem:[#allocation2] sm:$0xff] %vm746, %v1803
        %1806 = vst.msk [vmem:[#allocation2 + $0x8] sm:$0xff] %vm746, %v1804
        // Predicated region
        $region81: #{encoder_forward.1} parent=75 // pred_check
          %p1807 = pneg %p420
        $region82: #{encoder_forward.1} parent=75 // pred_check_branch
          %1809 = sbr.rel (%p1807) target = $region84
        $region83: #{encoder_forward.1} parent=75 // pred_region
          %s1810 = smul.u32 2, %s30
          %1812 = vsyncadd [#allocation3], 0
          %s1813 = smul.addr %s1810, 8
          %s1814 = scalar_lea.hbm %s14, %s1813
          %s1815 = sshll.u32 [#allocation2], 4
          %s1816 = int_to_ptr.vmem [resolvable:$true] %s1815
          %s1817 = sshll.u32 %s1814, 4
          %s1818 = int_to_ptr.hbm [resolvable:$true] %s1817
          %1823 = dma.vmem_to_hbm [thread:$0]  %s1816, 256, %s1818, [#allocation3], 128, 128, 8
        $region84: #{encoder_forward.1} parent=75 // pred_fallthru
          _
        // Predicated region
        $region85: #{encoder_forward.1} parent=75 // pred_check
          %p1824 = pneg %p420
        $region86: #{encoder_forward.1} parent=75 // pred_check_branch
          %1826 = sbr.rel (%p1824) target = $region88
        $region87: #{encoder_forward.1} parent=75 // pred_region
          %1828 = dma.done [#allocation3], 256
        $region88: #{encoder_forward.1} parent=75 // pred_fallthru
          _
      $region76: #{encoder_forward.1} parent=5 // pred_fallthru
        _
      %p1829 = scmp.le.s32.totalorder 2, %s21
      // Predicated region
      $region89: #{encoder_forward.1} parent=5 // pred_check
        %p1830 = pneg %p1829
      $region90: #{encoder_forward.1} parent=5 // pred_check_branch
        %1832 = sbr.rel (%p1830) target = $region92
      $region91: #{encoder_forward.1} parent=5 // pred_region
        %s1833 = ssub.s32 %s21, 2
      $region92: #{encoder_forward.1} parent=5 // pred_fallthru
        _
    $region6: #{encoder_forward.1} parent=1 // loop_footer
      %s25 = sadd.s32 1, %s21
    $region7: #{encoder_forward.1} parent=1 // loop_footer_branch
      %20 = sbr.rel target = $region3
    $region8: #{encoder_forward.1} parent=1 // loop_exit
      _
    %1834 = vsyncpa [#allocation3], 1
    %s1835 = scalar_lea.sflag [#allocation3], 1
    %1836 = vsyncpa %s1835, 1

</llo_original>
